<compile_context>
chip_gen: v7x
topology: tpu7x:2x2x1
jax: 0.10.0
libtpu: 0.0.40
codegen_flags: <defaults>
</compile_context>

<pallas_src>
import math
from functools import partial

import jax
import jax.numpy as jnp
from jax.experimental import pallas as pl
from jax.experimental.pallas import tpu as pltpu

EPS = 1e-5  # nn.BatchNorm1d default


def _gelu(x):
    # nn.GELU() default (approximate='none'): 0.5 * x * (1 + erf(x / sqrt(2)))
    return 0.5 * x * (1.0 + jax.lax.erf(x * (1.0 / math.sqrt(2.0))))


# ----------------------------- kernels -----------------------------

def _stats1_kernel(x_ref, w1_ref, hsum_ref, hsq_ref):
    """Accumulate per-channel sum / sumsq of h_pre = W1 @ x for this (batch, tile) block."""
    x = x_ref[0]                                                        # (C, TN)
    h = jnp.dot(w1_ref[...], x, preferred_element_type=jnp.float32)    # (Cmid, TN)
    hsum_ref[0, 0] = jnp.sum(h, axis=1, keepdims=True)                  # (Cmid, 1)
    hsq_ref[0, 0] = jnp.sum(h * h, axis=1, keepdims=True)


def _stats2_kernel(x_ref, w1_ref, sc1_ref, sh1_ref, w2_ref, ysum_ref, ysq_ref):
    """Accumulate per-channel sum / sumsq of y_pre = W2 @ GELU(BN1(W1 @ x))."""
    x = x_ref[0]                                                        # (C, TN)
    h = jnp.dot(w1_ref[...], x, preferred_element_type=jnp.float32)    # (Cmid, TN)
    h = _gelu(h * sc1_ref[...] + sh1_ref[...])
    y = jnp.dot(w2_ref[...], h, preferred_element_type=jnp.float32)    # (C, TN)
    ysum_ref[0, 0] = jnp.sum(y, axis=1, keepdims=True)                  # (C, 1)
    ysq_ref[0, 0] = jnp.sum(y * y, axis=1, keepdims=True)


def _final_kernel(x_ref, w1_ref, sc1_ref, sh1_ref, w2_ref, sc2_ref, sh2_ref, o_ref):
    """out = GELU(BN2(W2 @ GELU(BN1(W1 @ x))) + x), lane-dense (C, TN) store."""
    x = x_ref[0]                                                        # (C, TN)
    h = jnp.dot(w1_ref[...], x, preferred_element_type=jnp.float32)    # (Cmid, TN)
    h = _gelu(h * sc1_ref[...] + sh1_ref[...])
    y = jnp.dot(w2_ref[...], h, preferred_element_type=jnp.float32)    # (C, TN)
    y = y * sc2_ref[...] + sh2_ref[...]
    o_ref[0] = _gelu(y + x)


# ----------------------------- wrapper -----------------------------

def _pick_tile_n(n):
    # Largest lane-dense tile (multiple of 128) that divides N; otherwise fall back to the
    # full extent (full-dim blocks are always legal).  Sized far below VMEM limits even on
    # v7x's 64 MiB VMEM for realistic C, so no explicit vmem_limit_bytes needed.
    for cand in (512, 256, 128):
        if n % cand == 0:
            return cand
    return n


def conv_bn_relu_res1d(x, params):
    """x: (B, C, N) float32 in PyTorch NCW layout.  Returns (B, C, N) float32."""
    B, C, N = x.shape
    w1, b1, g1, be1, w2, b2, g2, be2 = params
    del b1, b2  # cancelled exactly by training-mode BatchNorm mean subtraction
    Cmid = w1.shape[0]

    # 1x1 conv weights -> plain (Cout, Cin) matrices; conv == W @ x over the channel axis.
    w1m = w1[:, :, 0]                   # (Cmid, C)
    w2m = w2[:, :, 0]                   # (C, Cmid)

    tile_n = _pick_tile_n(N)
    nt = N // tile_n
    grid = (B, nt)
    rows = float(B * N)

    x_spec = pl.BlockSpec((1, C, tile_n), lambda b, t: (b, 0, t))
    out_spec = pl.BlockSpec((1, C, tile_n), lambda b, t: (b, 0, t))
    w1_spec = pl.BlockSpec((Cmid, C), lambda b, t: (0, 0))
    w2_spec = pl.BlockSpec((C, Cmid), lambda b, t: (0, 0))
    vec1_spec = pl.BlockSpec((Cmid, 1), lambda b, t: (0, 0))
    vec2_spec = pl.BlockSpec((C, 1), lambda b, t: (0, 0))
    stat1_spec = pl.BlockSpec((1, 1, Cmid, 1), lambda b, t: (b, t, 0, 0))
    stat2_spec = pl.BlockSpec((1, 1, C, 1), lambda b, t: (b, t, 0, 0))

    cp = pltpu.CompilerParams(dimension_semantics=("parallel", "parallel"))

    # ---- pass 1: BN1 batch statistics of h_pre = W1 @ x ----
    h_sum, h_sq = pl.pallas_call(
        _stats1_kernel,
        grid=grid,
        in_specs=[x_spec, w1_spec],
        out_specs=(stat1_spec, stat1_spec),
        out_shape=(jax.ShapeDtypeStruct((B, nt, Cmid, 1), jnp.float32),
                   jax.ShapeDtypeStruct((B, nt, Cmid, 1), jnp.float32)),
        compiler_params=cp,
    )(x, w1m)

    mean1 = jnp.sum(h_sum, axis=(0, 1)) / rows                           # (Cmid, 1)
    var1 = jnp.maximum(jnp.sum(h_sq, axis=(0, 1)) / rows - mean1 * mean1, 0.0)
    scale1 = g1.reshape(Cmid, 1) * jax.lax.rsqrt(var1 + EPS)
    shift1 = be1.reshape(Cmid, 1) - mean1 * scale1

    # ---- pass 2: BN2 batch statistics of y_pre = W2 @ GELU(BN1(h_pre)) ----
    y_sum, y_sq = pl.pallas_call(
        _stats2_kernel,
        grid=grid,
        in_specs=[x_spec, w1_spec, vec1_spec, vec1_spec, w2_spec],
        out_specs=(stat2_spec, stat2_spec),
        out_shape=(jax.ShapeDtypeStruct((B, nt, C, 1), jnp.float32),
                   jax.ShapeDtypeStruct((B, nt, C, 1), jnp.float32)),
        compiler_params=cp,
    )(x, w1m, scale1, shift1, w2m)

    mean2 = jnp.sum(y_sum, axis=(0, 1)) / rows                           # (C, 1)
    var2 = jnp.maximum(jnp.sum(y_sq, axis=(0, 1)) / rows - mean2 * mean2, 0.0)
    scale2 = g2.reshape(C, 1) * jax.lax.rsqrt(var2 + EPS)
    shift2 = be2.reshape(C, 1) - mean2 * scale2

    # ---- pass 3: out = GELU(BN2(y_pre) + x), written lane-dense in NCW ----
    out = pl.pallas_call(
        _final_kernel,
        grid=grid,
        in_specs=[x_spec, w1_spec, vec1_spec, vec1_spec, w2_spec, vec2_spec, vec2_spec],
        out_specs=out_spec,
        out_shape=jax.ShapeDtypeStruct((B, C, N), jnp.float32),
        compiler_params=cp,
    )(x, w1m, scale1, shift1, w2m, scale2, shift2)
    return out


# ----------------------------- params / demo -----------------------------

def init_params(key, channel, res_expansion=1.0):
    cmid = int(channel * res_expansion)
    ks = jax.random.split(key, 8)
    bound1 = 1.0 / math.sqrt(channel)   # PyTorch Conv1d default init bound (k=1)
    bound2 = 1.0 / math.sqrt(cmid)
    w1 = jax.random.uniform(ks[0], (cmid, channel, 1), jnp.float32, -bound1, bound1)
    b1 = jax.random.uniform(ks[1], (cmid,), jnp.float32, -bound1, bound1)
    w2 = jax.random.uniform(ks[2], (channel, cmid, 1), jnp.float32, -bound2, bound2)
    b2 = jax.random.uniform(ks[3], (channel,), jnp.float32, -bound2, bound2)
    # BatchNorm affine params (made non-trivial so the BN path is exercised)
    g1 = 1.0 + 0.1 * jax.random.normal(ks[4], (cmid,), jnp.float32)
    be1 = 0.1 * jax.random.normal(ks[5], (cmid,), jnp.float32)
    g2 = 1.0 + 0.1 * jax.random.normal(ks[6], (channel,), jnp.float32)
    be2 = 0.1 * jax.random.normal(ks[7], (channel,), jnp.float32)
    return (w1, b1, g1, be1, w2, b2, g2, be2)


if __name__ == "__main__":
    B, C, N = 2, 16, 256     # batch, channels, sequence length (NCW); N lane-dense (2 tiles of 128)
    key = jax.random.PRNGKey(0)
    kx, kp = jax.random.split(key)
    x = jax.random.normal(kx, (B, C, N), jnp.float32)
    params = init_params(kp, C, res_expansion=1.0)

    out = jax.jit(partial(conv_bn_relu_res1d))(x, params)
    out = jax.block_until_ready(out)
    assert out.shape == (B, C, N) and out.dtype == jnp.float32
    assert bool(jnp.all(jnp.isfinite(out)))
    print("KERNEL_OK")
</pallas_src>

<mosaic_0001>
module attributes {stable_mosaic.version = 11 : i64} {
  func.func @_stats1_kernel(%arg0: i32, %arg1: i32, %arg2: memref<1x16x256xf32, #tpu.memory_space<vmem>>, %arg3: memref<16x16xf32, #tpu.memory_space<vmem>>, %arg4: memref<1x1x16x1xf32, #tpu.memory_space<vmem>>, %arg5: memref<1x1x16x1xf32, #tpu.memory_space<vmem>>) attributes {dimension_semantics = [#tpu.dimension_semantics<parallel>, #tpu.dimension_semantics<parallel>], iteration_bounds = array<i64: 2, 1>, scalar_prefetch = 0 : i64, scratch_operands = 0 : i64, tpu.core_type = #tpu.core_type<tc>, window_params = [{transform_indices = @transform_0, window_bounds = array<i64: 1, 16, 256>}, {pipeline_mode = #tpu.pipeline_mode<synchronous>, transform_indices = @transform_1, window_bounds = array<i64: 16, 16>}, {transform_indices = @transform_2, window_bounds = array<i64: 1, 1, 16, 1>}, {transform_indices = @transform_3, window_bounds = array<i64: 1, 1, 16, 1>}]} {
    %c0 = arith.constant 0 : index
    %c0_0 = arith.constant 0 : index
    %c0_1 = arith.constant 0 : index
    %0 = vector.load %arg2[%c0, %c0_0, %c0_1] : memref<1x16x256xf32, #tpu.memory_space<vmem>>, vector<1x16x256xf32>
    %1 = vector.shape_cast %0 : vector<1x16x256xf32> to vector<16x256xf32>
    %c0_2 = arith.constant 0 : index
    %c0_3 = arith.constant 0 : index
    %2 = vector.load %arg3[%c0_2, %c0_3] : memref<16x16xf32, #tpu.memory_space<vmem>>, vector<16x16xf32>
    %cst = arith.constant dense<0.000000e+00> : vector<16x256xf32>
    %3 = tpu.matmul %2, %1, %cst {dimension_numbers = #tpu.dot_dimension_numbers<[1], [0], [0], [1], [0, 0, 1, 1], [], []>} : vector<16x16xf32>, vector<16x256xf32>, vector<16x256xf32> -> vector<16x256xf32>
    %cst_4 = arith.constant dense<0.000000e+00> : vector<16xf32>
    %4 = vector.multi_reduction <add>, %3, %cst_4 [1] : vector<16x256xf32> to vector<16xf32>
    %5 = vector.shape_cast %4 : vector<16xf32> to vector<16x1xf32>
    %c0_5 = arith.constant 0 : index
    %c0_6 = arith.constant 0 : index
    %c0_7 = arith.constant 0 : index
    %c0_8 = arith.constant 0 : index
    %6 = vector.load %arg4[%c0_5, %c0_6, %c0_7, %c0_8] : memref<1x1x16x1xf32, #tpu.memory_space<vmem>>, vector<1x1x16x1xf32>
    %7 = vector.shape_cast %6 : vector<1x1x16x1xf32> to vector<16x1xf32>
    %8 = vector.shape_cast %5 : vector<16x1xf32> to vector<1x1x16x1xf32>
    tpu.vector_store %arg4[%c0_5, %c0_6, %c0_7, %c0_8], %8 {strides = array<i32>} : memref<1x1x16x1xf32, #tpu.memory_space<vmem>>, vector<1x1x16x1xf32>,
    %9 = arith.mulf %3, %3 : vector<16x256xf32>
    %cst_9 = arith.constant dense<0.000000e+00> : vector<16xf32>
    %10 = vector.multi_reduction <add>, %9, %cst_9 [1] : vector<16x256xf32> to vector<16xf32>
    %11 = vector.shape_cast %10 : vector<16xf32> to vector<16x1xf32>
    %c0_10 = arith.constant 0 : index
    %c0_11 = arith.constant 0 : index
    %c0_12 = arith.constant 0 : index
    %c0_13 = arith.constant 0 : index
    %12 = vector.load %arg5[%c0_10, %c0_11, %c0_12, %c0_13] : memref<1x1x16x1xf32, #tpu.memory_space<vmem>>, vector<1x1x16x1xf32>
    %13 = vector.shape_cast %12 : vector<1x1x16x1xf32> to vector<16x1xf32>
    %14 = vector.shape_cast %11 : vector<16x1xf32> to vector<1x1x16x1xf32>
    tpu.vector_store %arg5[%c0_10, %c0_11, %c0_12, %c0_13], %14 {strides = array<i32>} : memref<1x1x16x1xf32, #tpu.memory_space<vmem>>, vector<1x1x16x1xf32>,
    return
  }
  func.func @transform_0(%arg0: i32, %arg1: i32) -> (i32, i32, i32) {
    %c0_i32 = arith.constant 0 : i32
    %c0_i32_0 = arith.constant 0 : i32
    return %arg0, %c0_i32, %arg1 : i32, i32, i32
  }
  func.func @transform_1(%arg0: i32, %arg1: i32) -> (i32, i32) {
    %c0_i32 = arith.constant 0 : i32
    %c0_i32_0 = arith.constant 0 : i32
    %c0_i32_1 = arith.constant 0 : i32
    return %c0_i32, %c0_i32_0 : i32, i32
  }
  func.func @transform_2(%arg0: i32, %arg1: i32) -> (i32, i32, i32, i32) {
    %c0_i32 = arith.constant 0 : i32
    %c0_i32_0 = arith.constant 0 : i32
    %c0_i32_1 = arith.constant 0 : i32
    return %arg0, %arg1, %c0_i32, %c0_i32_0 : i32, i32, i32, i32
  }
  func.func @transform_3(%arg0: i32, %arg1: i32) -> (i32, i32, i32, i32) {
    %c0_i32 = arith.constant 0 : i32
    %c0_i32_0 = arith.constant 0 : i32
    %c0_i32_1 = arith.constant 0 : i32
    return %arg0, %arg1, %c0_i32, %c0_i32_0 : i32, i32, i32, i32
  }
}

module attributes {stable_mosaic.version = 11 : i64} {
  func.func @_stats2_kernel(%arg0: i32, %arg1: i32, %arg2: memref<1x16x256xf32, #tpu.memory_space<vmem>>, %arg3: memref<16x16xf32, #tpu.memory_space<vmem>>, %arg4: memref<16x1xf32, #tpu.memory_space<vmem>>, %arg5: memref<16x1xf32, #tpu.memory_space<vmem>>, %arg6: memref<16x16xf32, #tpu.memory_space<vmem>>, %arg7: memref<1x1x16x1xf32, #tpu.memory_space<vmem>>, %arg8: memref<1x1x16x1xf32, #tpu.memory_space<vmem>>) attributes {dimension_semantics = [#tpu.dimension_semantics<parallel>, #tpu.dimension_semantics<parallel>], iteration_bounds = array<i64: 2, 1>, scalar_prefetch = 0 : i64, scratch_operands = 0 : i64, tpu.core_type = #tpu.core_type<tc>, window_params = [{transform_indices = @transform_0, window_bounds = array<i64: 1, 16, 256>}, {pipeline_mode = #tpu.pipeline_mode<synchronous>, transform_indices = @transform_1, window_bounds = array<i64: 16, 16>}, {pipeline_mode = #tpu.pipeline_mode<synchronous>, transform_indices = @transform_2, window_bounds = array<i64: 16, 1>}, {pipeline_mode = #tpu.pipeline_mode<synchronous>, transform_indices = @transform_3, window_bounds = array<i64: 16, 1>}, {pipeline_mode = #tpu.pipeline_mode<synchronous>, transform_indices = @transform_4, window_bounds = array<i64: 16, 16>}, {transform_indices = @transform_5, window_bounds = array<i64: 1, 1, 16, 1>}, {transform_indices = @transform_6, window_bounds = array<i64: 1, 1, 16, 1>}]} {
    %c0 = arith.constant 0 : index
    %c0_0 = arith.constant 0 : index
    %c0_1 = arith.constant 0 : index
    %0 = vector.load %arg2[%c0, %c0_0, %c0_1] : memref<1x16x256xf32, #tpu.memory_space<vmem>>, vector<1x16x256xf32>
    %1 = vector.shape_cast %0 : vector<1x16x256xf32> to vector<16x256xf32>
    %c0_2 = arith.constant 0 : index
    %c0_3 = arith.constant 0 : index
    %2 = vector.load %arg3[%c0_2, %c0_3] : memref<16x16xf32, #tpu.memory_space<vmem>>, vector<16x16xf32>
    %cst = arith.constant dense<0.000000e+00> : vector<16x256xf32>
    %3 = tpu.matmul %2, %1, %cst {dimension_numbers = #tpu.dot_dimension_numbers<[1], [0], [0], [1], [0, 0, 1, 1], [], []>} : vector<16x16xf32>, vector<16x256xf32>, vector<16x256xf32> -> vector<16x256xf32>
    %c0_4 = arith.constant 0 : index
    %c0_5 = arith.constant 0 : index
    %4 = vector.load %arg4[%c0_4, %c0_5] : memref<16x1xf32, #tpu.memory_space<vmem>>, vector<16x1xf32>
    %5 = vector.broadcast %4 : vector<16x1xf32> to vector<16x256xf32>
    %6 = arith.mulf %3, %5 : vector<16x256xf32>
    %c0_6 = arith.constant 0 : index
    %c0_7 = arith.constant 0 : index
    %7 = vector.load %arg5[%c0_6, %c0_7] : memref<16x1xf32, #tpu.memory_space<vmem>>, vector<16x1xf32>
    %8 = vector.broadcast %7 : vector<16x1xf32> to vector<16x256xf32>
    %9 = arith.addf %6, %8 : vector<16x256xf32>
    %cst_8 = arith.constant 5.000000e-01 : f32
    %10 = vector.broadcast %cst_8 : f32 to vector<16x256xf32>
    %11 = arith.mulf %10, %9 : vector<16x256xf32>
    %cst_9 = arith.constant 0.707106769 : f32
    %12 = vector.broadcast %cst_9 : f32 to vector<16x256xf32>
    %13 = arith.mulf %9, %12 : vector<16x256xf32>
    %14 = math.erf %13 : vector<16x256xf32>
    %cst_10 = arith.constant 1.000000e+00 : f32
    %15 = vector.broadcast %cst_10 : f32 to vector<16x256xf32>
    %16 = arith.addf %15, %14 : vector<16x256xf32>
    %17 = arith.mulf %11, %16 : vector<16x256xf32>
    %c0_11 = arith.constant 0 : index
    %c0_12 = arith.constant 0 : index
    %18 = vector.load %arg6[%c0_11, %c0_12] : memref<16x16xf32, #tpu.memory_space<vmem>>, vector<16x16xf32>
    %cst_13 = arith.constant dense<0.000000e+00> : vector<16x256xf32>
    %19 = tpu.matmul %18, %17, %cst_13 {dimension_numbers = #tpu.dot_dimension_numbers<[1], [0], [0], [1], [0, 0, 1, 1], [], []>} : vector<16x16xf32>, vector<16x256xf32>, vector<16x256xf32> -> vector<16x256xf32>
    %cst_14 = arith.constant dense<0.000000e+00> : vector<16xf32>
    %20 = vector.multi_reduction <add>, %19, %cst_14 [1] : vector<16x256xf32> to vector<16xf32>
    %21 = vector.shape_cast %20 : vector<16xf32> to vector<16x1xf32>
    %c0_15 = arith.constant 0 : index
    %c0_16 = arith.constant 0 : index
    %c0_17 = arith.constant 0 : index
    %c0_18 = arith.constant 0 : index
    %22 = vector.load %arg7[%c0_15, %c0_16, %c0_17, %c0_18] : memref<1x1x16x1xf32, #tpu.memory_space<vmem>>, vector<1x1x16x1xf32>
    %23 = vector.shape_cast %22 : vector<1x1x16x1xf32> to vector<16x1xf32>
    %24 = vector.shape_cast %21 : vector<16x1xf32> to vector<1x1x16x1xf32>
    tpu.vector_store %arg7[%c0_15, %c0_16, %c0_17, %c0_18], %24 {strides = array<i32>} : memref<1x1x16x1xf32, #tpu.memory_space<vmem>>, vector<1x1x16x1xf32>,
    %25 = arith.mulf %19, %19 : vector<16x256xf32>
    %cst_19 = arith.constant dense<0.000000e+00> : vector<16xf32>
    %26 = vector.multi_reduction <add>, %25, %cst_19 [1] : vector<16x256xf32> to vector<16xf32>
    %27 = vector.shape_cast %26 : vector<16xf32> to vector<16x1xf32>
    %c0_20 = arith.constant 0 : index
    %c0_21 = arith.constant 0 : index
    %c0_22 = arith.constant 0 : index
    %c0_23 = arith.constant 0 : index
    %28 = vector.load %arg8[%c0_20, %c0_21, %c0_22, %c0_23] : memref<1x1x16x1xf32, #tpu.memory_space<vmem>>, vector<1x1x16x1xf32>
    %29 = vector.shape_cast %28 : vector<1x1x16x1xf32> to vector<16x1xf32>
    %30 = vector.shape_cast %27 : vector<16x1xf32> to vector<1x1x16x1xf32>
    tpu.vector_store %arg8[%c0_20, %c0_21, %c0_22, %c0_23], %30 {strides = array<i32>} : memref<1x1x16x1xf32, #tpu.memory_space<vmem>>, vector<1x1x16x1xf32>,
    return
  }
  func.func @transform_0(%arg0: i32, %arg1: i32) -> (i32, i32, i32) {
    %c0_i32 = arith.constant 0 : i32
    %c0_i32_0 = arith.constant 0 : i32
    return %arg0, %c0_i32, %arg1 : i32, i32, i32
  }
  func.func @transform_1(%arg0: i32, %arg1: i32) -> (i32, i32) {
    %c0_i32 = arith.constant 0 : i32
    %c0_i32_0 = arith.constant 0 : i32
    %c0_i32_1 = arith.constant 0 : i32
    return %c0_i32, %c0_i32_0 : i32, i32
  }
  func.func @transform_2(%arg0: i32, %arg1: i32) -> (i32, i32) {
    %c0_i32 = arith.constant 0 : i32
    %c0_i32_0 = arith.constant 0 : i32
    %c0_i32_1 = arith.constant 0 : i32
    return %c0_i32, %c0_i32_0 : i32, i32
  }
  func.func @transform_3(%arg0: i32, %arg1: i32) -> (i32, i32) {
    %c0_i32 = arith.constant 0 : i32
    %c0_i32_0 = arith.constant 0 : i32
    %c0_i32_1 = arith.constant 0 : i32
    return %c0_i32, %c0_i32_0 : i32, i32
  }
  func.func @transform_4(%arg0: i32, %arg1: i32) -> (i32, i32) {
    %c0_i32 = arith.constant 0 : i32
    %c0_i32_0 = arith.constant 0 : i32
    %c0_i32_1 = arith.constant 0 : i32
    return %c0_i32, %c0_i32_0 : i32, i32
  }
  func.func @transform_5(%arg0: i32, %arg1: i32) -> (i32, i32, i32, i32) {
    %c0_i32 = arith.constant 0 : i32
    %c0_i32_0 = arith.constant 0 : i32
    %c0_i32_1 = arith.constant 0 : i32
    return %arg0, %arg1, %c0_i32, %c0_i32_0 : i32, i32, i32, i32
  }
  func.func @transform_6(%arg0: i32, %arg1: i32) -> (i32, i32, i32, i32) {
    %c0_i32 = arith.constant 0 : i32
    %c0_i32_0 = arith.constant 0 : i32
    %c0_i32_1 = arith.constant 0 : i32
    return %arg0, %arg1, %c0_i32, %c0_i32_0 : i32, i32, i32, i32
  }
}

module attributes {stable_mosaic.version = 11 : i64} {
  func.func @_final_kernel(%arg0: i32, %arg1: i32, %arg2: memref<1x16x256xf32, #tpu.memory_space<vmem>>, %arg3: memref<16x16xf32, #tpu.memory_space<vmem>>, %arg4: memref<16x1xf32, #tpu.memory_space<vmem>>, %arg5: memref<16x1xf32, #tpu.memory_space<vmem>>, %arg6: memref<16x16xf32, #tpu.memory_space<vmem>>, %arg7: memref<16x1xf32, #tpu.memory_space<vmem>>, %arg8: memref<16x1xf32, #tpu.memory_space<vmem>>, %arg9: memref<1x16x256xf32, #tpu.memory_space<vmem>>) attributes {dimension_semantics = [#tpu.dimension_semantics<parallel>, #tpu.dimension_semantics<parallel>], iteration_bounds = array<i64: 2, 1>, scalar_prefetch = 0 : i64, scratch_operands = 0 : i64, tpu.core_type = #tpu.core_type<tc>, window_params = [{transform_indices = @transform_0, window_bounds = array<i64: 1, 16, 256>}, {pipeline_mode = #tpu.pipeline_mode<synchronous>, transform_indices = @transform_1, window_bounds = array<i64: 16, 16>}, {pipeline_mode = #tpu.pipeline_mode<synchronous>, transform_indices = @transform_2, window_bounds = array<i64: 16, 1>}, {pipeline_mode = #tpu.pipeline_mode<synchronous>, transform_indices = @transform_3, window_bounds = array<i64: 16, 1>}, {pipeline_mode = #tpu.pipeline_mode<synchronous>, transform_indices = @transform_4, window_bounds = array<i64: 16, 16>}, {pipeline_mode = #tpu.pipeline_mode<synchronous>, transform_indices = @transform_5, window_bounds = array<i64: 16, 1>}, {pipeline_mode = #tpu.pipeline_mode<synchronous>, transform_indices = @transform_6, window_bounds = array<i64: 16, 1>}, {transform_indices = @transform_7, window_bounds = array<i64: 1, 16, 256>}]} {
    %c0 = arith.constant 0 : index
    %c0_0 = arith.constant 0 : index
    %c0_1 = arith.constant 0 : index
    %0 = vector.load %arg2[%c0, %c0_0, %c0_1] : memref<1x16x256xf32, #tpu.memory_space<vmem>>, vector<1x16x256xf32>
    %1 = vector.shape_cast %0 : vector<1x16x256xf32> to vector<16x256xf32>
    %c0_2 = arith.constant 0 : index
    %c0_3 = arith.constant 0 : index
    %2 = vector.load %arg3[%c0_2, %c0_3] : memref<16x16xf32, #tpu.memory_space<vmem>>, vector<16x16xf32>
    %cst = arith.constant dense<0.000000e+00> : vector<16x256xf32>
    %3 = tpu.matmul %2, %1, %cst {dimension_numbers = #tpu.dot_dimension_numbers<[1], [0], [0], [1], [0, 0, 1, 1], [], []>} : vector<16x16xf32>, vector<16x256xf32>, vector<16x256xf32> -> vector<16x256xf32>
    %c0_4 = arith.constant 0 : index
    %c0_5 = arith.constant 0 : index
    %4 = vector.load %arg4[%c0_4, %c0_5] : memref<16x1xf32, #tpu.memory_space<vmem>>, vector<16x1xf32>
    %5 = vector.broadcast %4 : vector<16x1xf32> to vector<16x256xf32>
    %6 = arith.mulf %3, %5 : vector<16x256xf32>
    %c0_6 = arith.constant 0 : index
    %c0_7 = arith.constant 0 : index
    %7 = vector.load %arg5[%c0_6, %c0_7] : memref<16x1xf32, #tpu.memory_space<vmem>>, vector<16x1xf32>
    %8 = vector.broadcast %7 : vector<16x1xf32> to vector<16x256xf32>
    %9 = arith.addf %6, %8 : vector<16x256xf32>
    %cst_8 = arith.constant 5.000000e-01 : f32
    %10 = vector.broadcast %cst_8 : f32 to vector<16x256xf32>
    %11 = arith.mulf %10, %9 : vector<16x256xf32>
    %cst_9 = arith.constant 0.707106769 : f32
    %12 = vector.broadcast %cst_9 : f32 to vector<16x256xf32>
    %13 = arith.mulf %9, %12 : vector<16x256xf32>
    %14 = math.erf %13 : vector<16x256xf32>
    %cst_10 = arith.constant 1.000000e+00 : f32
    %15 = vector.broadcast %cst_10 : f32 to vector<16x256xf32>
    %16 = arith.addf %15, %14 : vector<16x256xf32>
    %17 = arith.mulf %11, %16 : vector<16x256xf32>
    %c0_11 = arith.constant 0 : index
    %c0_12 = arith.constant 0 : index
    %18 = vector.load %arg6[%c0_11, %c0_12] : memref<16x16xf32, #tpu.memory_space<vmem>>, vector<16x16xf32>
    %cst_13 = arith.constant dense<0.000000e+00> : vector<16x256xf32>
    %19 = tpu.matmul %18, %17, %cst_13 {dimension_numbers = #tpu.dot_dimension_numbers<[1], [0], [0], [1], [0, 0, 1, 1], [], []>} : vector<16x16xf32>, vector<16x256xf32>, vector<16x256xf32> -> vector<16x256xf32>
    %c0_14 = arith.constant 0 : index
    %c0_15 = arith.constant 0 : index
    %20 = vector.load %arg7[%c0_14, %c0_15] : memref<16x1xf32, #tpu.memory_space<vmem>>, vector<16x1xf32>
    %21 = vector.broadcast %20 : vector<16x1xf32> to vector<16x256xf32>
    %22 = arith.mulf %19, %21 : vector<16x256xf32>
    %c0_16 = arith.constant 0 : index
    %c0_17 = arith.constant 0 : index
    %23 = vector.load %arg8[%c0_16, %c0_17] : memref<16x1xf32, #tpu.memory_space<vmem>>, vector<16x1xf32>
    %24 = vector.broadcast %23 : vector<16x1xf32> to vector<16x256xf32>
    %25 = arith.addf %22, %24 : vector<16x256xf32>
    %26 = arith.addf %25, %1 : vector<16x256xf32>
    %cst_18 = arith.constant 5.000000e-01 : f32
    %27 = vector.broadcast %cst_18 : f32 to vector<16x256xf32>
    %28 = arith.mulf %27, %26 : vector<16x256xf32>
    %cst_19 = arith.constant 0.707106769 : f32
    %29 = vector.broadcast %cst_19 : f32 to vector<16x256xf32>
    %30 = arith.mulf %26, %29 : vector<16x256xf32>
    %31 = math.erf %30 : vector<16x256xf32>
    %cst_20 = arith.constant 1.000000e+00 : f32
    %32 = vector.broadcast %cst_20 : f32 to vector<16x256xf32>
    %33 = arith.addf %32, %31 : vector<16x256xf32>
    %34 = arith.mulf %28, %33 : vector<16x256xf32>
    %c0_21 = arith.constant 0 : index
    %c0_22 = arith.constant 0 : index
    %c0_23 = arith.constant 0 : index
    %35 = vector.load %arg9[%c0_21, %c0_22, %c0_23] : memref<1x16x256xf32, #tpu.memory_space<vmem>>, vector<1x16x256xf32>
    %36 = vector.shape_cast %35 : vector<1x16x256xf32> to vector<16x256xf32>
    %37 = vector.shape_cast %34 : vector<16x256xf32> to vector<1x16x256xf32>
    tpu.vector_store %arg9[%c0_21, %c0_22, %c0_23], %37 {strides = array<i32>} : memref<1x16x256xf32, #tpu.memory_space<vmem>>, vector<1x16x256xf32>,
    return
  }
  func.func @transform_0(%arg0: i32, %arg1: i32) -> (i32, i32, i32) {
    %c0_i32 = arith.constant 0 : i32
    %c0_i32_0 = arith.constant 0 : i32
    return %arg0, %c0_i32, %arg1 : i32, i32, i32
  }
  func.func @transform_1(%arg0: i32, %arg1: i32) -> (i32, i32) {
    %c0_i32 = arith.constant 0 : i32
    %c0_i32_0 = arith.constant 0 : i32
    %c0_i32_1 = arith.constant 0 : i32
    return %c0_i32, %c0_i32_0 : i32, i32
  }
  func.func @transform_2(%arg0: i32, %arg1: i32) -> (i32, i32) {
    %c0_i32 = arith.constant 0 : i32
    %c0_i32_0 = arith.constant 0 : i32
    %c0_i32_1 = arith.constant 0 : i32
    return %c0_i32, %c0_i32_0 : i32, i32
  }
  func.func @transform_3(%arg0: i32, %arg1: i32) -> (i32, i32) {
    %c0_i32 = arith.constant 0 : i32
    %c0_i32_0 = arith.constant 0 : i32
    %c0_i32_1 = arith.constant 0 : i32
    return %c0_i32, %c0_i32_0 : i32, i32
  }
  func.func @transform_4(%arg0: i32, %arg1: i32) -> (i32, i32) {
    %c0_i32 = arith.constant 0 : i32
    %c0_i32_0 = arith.constant 0 : i32
    %c0_i32_1 = arith.constant 0 : i32
    return %c0_i32, %c0_i32_0 : i32, i32
  }
  func.func @transform_5(%arg0: i32, %arg1: i32) -> (i32, i32) {
    %c0_i32 = arith.constant 0 : i32
    %c0_i32_0 = arith.constant 0 : i32
    %c0_i32_1 = arith.constant 0 : i32
    return %c0_i32, %c0_i32_0 : i32, i32
  }
  func.func @transform_6(%arg0: i32, %arg1: i32) -> (i32, i32) {
    %c0_i32 = arith.constant 0 : i32
    %c0_i32_0 = arith.constant 0 : i32
    %c0_i32_1 = arith.constant 0 : i32
    return %c0_i32, %c0_i32_0 : i32, i32
  }
  func.func @transform_7(%arg0: i32, %arg1: i32) -> (i32, i32, i32) {
    %c0_i32 = arith.constant 0 : i32
    %c0_i32_0 = arith.constant 0 : i32
    return %arg0, %c0_i32, %arg1 : i32, i32, i32
  }
}

</mosaic_0001>

<llo_original>
// kernel: conv_bn_relu_res1d.3
$region0: #{conv_bn_relu_res1d.3}
  #allocation0 [shape = 'u32[]', space=smem, size = 0x4, offset = 0x4, fixed_abs, tag = 'smem constant byte address 0x4 - core index']
  #allocation1 [shape = 'u32[144,128]{1,0:T(1,128)}', space=vmem, size = 0x12000, scoped, tag = 'internal scratch']
  %s0 = inlined_call_operand.hbm [shape: f32[2,16,256], index: 0, kind: input, shape index: {}]
  %s1 = inlined_call_operand.hbm [shape: f32[16,16], index: 1, kind: input, shape index: {}]
  %s2 = inlined_call_operand.vmem [shape: f32[2,1,16,1], index: 2, kind: output, shape index: {0}]
  %s3 = inlined_call_operand.vmem [shape: f32[2,1,16,1], index: 3, kind: output, shape index: {1}]
  %4 = xla_tuple %s2, %s3
  %s5 = sld [smem:[#allocation0]]
  $region57: #{conv_bn_relu_res1d.3} parent=0
    _
  %s7 = ssub.s32 1, %s5
  %s8 = scalar_select 0, %s7, %s5
  $region1: #{conv_bn_relu_res1d.3} parent=0
    #allocation2 [shape = 'u8[32768]{0}', space=vmem, size = 0x8000, scoped, tag = 'input window, operand 0']
    #allocation3 [shape = 's32[2]{0}', space=sflag, size = 0x8, scoped, tag = 'scoped memory for conv_bn_relu_res1d.3']
    #allocation4 [shape = 'u8[8192]{0}', space=vmem, size = 0x2000, scoped, tag = 'input window, operand 1, single buffered']
    #allocation5 [shape = 's32[1]{0}', space=sflag, size = 0x4, scoped, tag = 'scoped memory for conv_bn_relu_res1d.3']
    %9 = vsyncpa [#allocation3], 0
    %s10 = scalar_lea.sflag [#allocation3], 1
    %11 = vsyncpa %s10, 0
    %12 = vsyncpa [#allocation5], 0
    loop: start=0, step=1, limit=4
    $region2: #{conv_bn_relu_res1d.3} parent=1 // loop_pre_header
      _
    $region3: #{conv_bn_relu_res1d.3} parent=1 // loop_header
      %s14 = sphi 0, %s18
      %p15 = scmp.ge.s32.totalorder %s14, 4
      %s21 = sphi 0, %s33
      %s22 = sphi 0, %s29
      %s23 = sphi 0, %s21
      %s24 = sphi 0, %s22
      %s25 = sphi 0, %s23
      %s26 = sphi 0, %s24
      %s38 = sphi 0, %s40
      %s41 = sphi 0, %s38
      %s42 = sphi 0, %s41
      %s58 = sphi 0, %s42
      %s62 = sphi 0, %s62
      %s64 = sphi 0, %s62
      %s65 = sphi 0, %s64
      %s79 = sphi 0, %s65
      %s87 = sphi 0, %s89
      %s90 = sphi 0, %s87
      %s91 = sphi 0, %s90
      %s107 = sphi 0, %s91
      %s115 = sphi 0, %s117
      %s118 = sphi 0, %s115
      %s119 = sphi 0, %s118
      %s135 = sphi 0, %s119
    $region4: #{conv_bn_relu_res1d.3} parent=1 // loop_header_branch
      %17 = sbr.rel (%p15) target = $region8
    $region5: #{conv_bn_relu_res1d.3} parent=1 // loop_body
      %s19 = ssub.s32 %s14, 1
      %s20 = ssub.s32 %s14, 2
      %s27 = sadd.s32 1, %s22
      %p28 = scmp.ge.s32.totalorder %s27, 1
      %s29 = scalar_select %p28, 0, %s27
      %s30 = sadd.s32 1, %s21
      %s31 = scalar_select %p28, %s30, %s21
      %p32 = scmp.ge.s32.totalorder %s31, 2
      %s33 = scalar_select %p32, 0, %s31
      %s34 = ssub.s32 %s21, %s33
      %s35 = ssub.s32 %s22, %s29
      %s36 = sor.u32 %s34, %s35
      %p37 = scmp.eq.s32.totalorder %s36, 0
      %s39 = sadd.s32 %s38, 1
      %s40 = scalar_select %p37, %s38, %s39
      %p43 = pneg %p37
      %p44 = scmp.eq.s32.totalorder %s14, 1
      %p45 = por %p43, %p44
      %p46 = scmp.ne.s32.totalorder %s38, %s41
      %p47 = scmp.eq.s32.totalorder %s14, 0
      %p48 = por %p46, %p47
      %p49 = scmp.ne.s32.totalorder %s38, %s41
      %p50 = scmp.eq.s32.totalorder %s19, 1
      %p51 = por %p49, %p50
      %p52 = scmp.ne.s32.totalorder %s41, %s42
      %p53 = scmp.eq.s32.totalorder %s19, 0
      %p54 = por %p52, %p53
      %p55 = scmp.ne.s32.totalorder %s41, %s42
      %p56 = scmp.eq.s32.totalorder %s20, 1
      %p57 = por %p55, %p56
      %p59 = scmp.ne.s32.totalorder %s42, %s58
      %p60 = scmp.eq.s32.totalorder %s20, 0
      %p61 = por %p59, %p60
      %s63 = sadd.s32 %s62, 1
      %p66 = scmp.eq.s32.totalorder %s14, 1
      %p67 = scmp.ne.s32.totalorder %s62, %s64
      %p68 = scmp.eq.s32.totalorder %s14, 0
      %p69 = por %p67, %p68
      %p70 = scmp.ne.s32.totalorder %s62, %s64
      %p71 = scmp.eq.s32.totalorder %s19, 1
      %p72 = por %p70, %p71
      %p73 = scmp.ne.s32.totalorder %s64, %s65
      %p74 = scmp.eq.s32.totalorder %s19, 0
      %p75 = por %p73, %p74
      %p76 = scmp.ne.s32.totalorder %s64, %s65
      %p77 = scmp.eq.s32.totalorder %s20, 1
      %p78 = por %p76, %p77
      %p80 = scmp.ne.s32.totalorder %s65, %s79
      %p81 = scmp.eq.s32.totalorder %s20, 0
      %p82 = por %p80, %p81
      %s83 = ssub.s32 %s21, %s33
      %s84 = ssub.s32 %s22, %s29
      %s85 = sor.u32 %s83, %s84
      %p86 = scmp.eq.s32.totalorder %s85, 0
      %s88 = sadd.s32 %s87, 1
      %s89 = scalar_select %p86, %s87, %s88
      %p92 = pneg %p86
      %p93 = scmp.eq.s32.totalorder %s14, 1
      %p94 = por %p92, %p93
      %p95 = scmp.ne.s32.totalorder %s87, %s90
      %p96 = scmp.eq.s32.totalorder %s14, 0
      %p97 = por %p95, %p96
      %p98 = scmp.ne.s32.totalorder %s87, %s90
      %p99 = scmp.eq.s32.totalorder %s19, 1
      %p100 = por %p98, %p99
      %p101 = scmp.ne.s32.totalorder %s90, %s91
      %p102 = scmp.eq.s32.totalorder %s19, 0
      %p103 = por %p101, %p102
      %p104 = scmp.ne.s32.totalorder %s90, %s91
      %p105 = scmp.eq.s32.totalorder %s20, 1
      %p106 = por %p104, %p105
      %p108 = scmp.ne.s32.totalorder %s91, %s107
      %p109 = scmp.eq.s32.totalorder %s20, 0
      %p110 = por %p108, %p109
      %s111 = ssub.s32 %s21, %s33
      %s112 = ssub.s32 %s22, %s29
      %s113 = sor.u32 %s111, %s112
      %p114 = scmp.eq.s32.totalorder %s113, 0
      %s116 = sadd.s32 %s115, 1
      %s117 = scalar_select %p114, %s115, %s116
      %p120 = pneg %p114
      %p121 = scmp.eq.s32.totalorder %s14, 1
      %p122 = por %p120, %p121
      %p123 = scmp.ne.s32.totalorder %s115, %s118
      %p124 = scmp.eq.s32.totalorder %s14, 0
      %p125 = por %p123, %p124
      %p126 = scmp.ne.s32.totalorder %s115, %s118
      %p127 = scmp.eq.s32.totalorder %s19, 1
      %p128 = por %p126, %p127
      %p129 = scmp.ne.s32.totalorder %s118, %s119
      %p130 = scmp.eq.s32.totalorder %s19, 0
      %p131 = por %p129, %p130
      %p132 = scmp.ne.s32.totalorder %s118, %s119
      %p133 = scmp.eq.s32.totalorder %s20, 1
      %p134 = por %p132, %p133
      %p136 = scmp.ne.s32.totalorder %s119, %s135
      %p137 = scmp.eq.s32.totalorder %s20, 0
      %p138 = por %p136, %p137
      %p139 = scmp.le.s32.totalorder 1, %s14
      %p140 = scmp.lt.s32.totalorder %s14, 3
      %p141 = pnand %p139, %p140
      %p142 = pneg %p141
      // Predicated region
      $region9: #{conv_bn_relu_res1d.3} parent=5 // pred_check
        _
      $region10: #{conv_bn_relu_res1d.3} parent=5 // pred_check_branch
        %144 = sbr.rel (%p141) target = $region12
      $region11: #{conv_bn_relu_res1d.3} parent=5 // pred_region
        %s145 = ssub.s32 %s14, 1
        // Predicated region
        $region13: #{conv_bn_relu_res1d.3} parent=11 // pred_check
          %p146 = pneg %p75
        $region14: #{conv_bn_relu_res1d.3} parent=11 // pred_check_branch
          %148 = sbr.rel (%p146) target = $region16
        $region15: #{conv_bn_relu_res1d.3} parent=11 // pred_region
          %s150 = ssub.s32 256, 256
          %151 = vsyncadd [#allocation5], %s150
          %s152 = sshll.u32 [#allocation4], 4
          %s153 = int_to_ptr.vmem [resolvable:$true] %s152
          %158 = dma.hbm_to_vmem [thread:$0]  %s1, 256, %s153, [#allocation5], 128, 128, 8
        $region16: #{conv_bn_relu_res1d.3} parent=11 // pred_fallthru
          _
      $region12: #{conv_bn_relu_res1d.3} parent=5 // pred_fallthru
        _
      %p159 = scmp.lt.s32.totalorder %s14, 2
      // Predicated region
      $region17: #{conv_bn_relu_res1d.3} parent=5 // pred_check
        %p160 = pneg %p159
      $region18: #{conv_bn_relu_res1d.3} parent=5 // pred_check_branch
        %162 = sbr.rel (%p160) target = $region20
      $region19: #{conv_bn_relu_res1d.3} parent=5 // pred_region
        // Predicated region
        $region21: #{conv_bn_relu_res1d.3} parent=19 // pred_check
          %p163 = pneg %p48
        $region22: #{conv_bn_relu_res1d.3} parent=19 // pred_check_branch
          %165 = sbr.rel (%p163) target = $region24
        $region23: #{conv_bn_relu_res1d.3} parent=19 // pred_region
          %s166 = sand.u32 %s38, 1
          %s167 = scalar_lea.sflag [#allocation3], %s166
          %s168 = sand.u32 %s38, 1
          %s169 = smul.addr %s168, 32
          %s170 = scalar_lea.vmem [#allocation2], %s169
          %s171 = smul.u32 2, %s22
          %s173 = ssub.s32 512, 512
          %174 = vsyncadd %s167, %s173
          %s175 = smul.addr %s21, 4
          %s176 = sadd.s32 %s171, %s175
          %s177 = smul.addr %s176, 128
          %s178 = scalar_lea.hbm %s0, %s177
          %s179 = sshll.u32 %s170, 4
          %s180 = int_to_ptr.vmem [resolvable:$true] %s179
          %185 = dma.hbm_to_vmem [thread:$0]  %s178, 512, %s180, %s167, 256, 256, 16
        $region24: #{conv_bn_relu_res1d.3} parent=19 // pred_fallthru
          _
      $region20: #{conv_bn_relu_res1d.3} parent=5 // pred_fallthru
        _
      %p186 = scmp.le.s32.totalorder 1, %s14
      %p187 = scmp.lt.s32.totalorder %s14, 3
      %p188 = pnand %p186, %p187
      %p189 = pneg %p188
      // Predicated region
      $region25: #{conv_bn_relu_res1d.3} parent=5 // pred_check
        _
      $region26: #{conv_bn_relu_res1d.3} parent=5 // pred_check_branch
        %191 = sbr.rel (%p188) target = $region28
      $region27: #{conv_bn_relu_res1d.3} parent=5 // pred_region
        %s192 = ssub.s32 %s14, 1
        %s193 = sand.u32 %s41, 1
        %s194 = scalar_lea.sflag [#allocation3], %s193
        %s195 = sand.u32 %s41, 1
        %s196 = smul.addr %s195, 32
        %s197 = scalar_lea.vmem [#allocation2], %s196
        // Predicated region
        $region29: #{conv_bn_relu_res1d.3} parent=27 // pred_check
          %p198 = pneg %p54
        $region30: #{conv_bn_relu_res1d.3} parent=27 // pred_check_branch
          %200 = sbr.rel (%p198) target = $region32
        $region31: #{conv_bn_relu_res1d.3} parent=27 // pred_region
          %201 = dma.done %s194, 512
        $region32: #{conv_bn_relu_res1d.3} parent=27 // pred_fallthru
          _
        // Predicated region
        $region33: #{conv_bn_relu_res1d.3} parent=27 // pred_check
          %p202 = pneg %p75
        $region34: #{conv_bn_relu_res1d.3} parent=27 // pred_check_branch
          %204 = sbr.rel (%p202) target = $region36
        $region35: #{conv_bn_relu_res1d.3} parent=27 // pred_region
          %205 = dma.done [#allocation5], 256
        $region36: #{conv_bn_relu_res1d.3} parent=27 // pred_fallthru
          _
        %s206 = sand.u32 %s41, 1
        %s207 = scalar_lea.sflag [#allocation3], %s206
        %s208 = sand.u32 %s41, 1
        %s209 = smul.addr %s208, 32
        %s210 = scalar_lea.vmem [#allocation2], %s209
        %p211 = pneg %p54
        %p212 = pneg %p51
        %p213 = pneg %p75
        %p214 = pneg %p72
        %p215 = pneg %p103
        %p216 = pneg %p100
        %p217 = scmp.lt.s32.totalorder %s23, 1
        %s218 = scalar_select %p217, %s23, 1
        %p219 = scmp.lt.s32.totalorder %s24, 0
        %s220 = scalar_select %p219, %s24, 0
        %s221 = smul.addr %s220, 2
        %s222 = smul.addr %s218, 2
        %s223 = sadd.s32 %s221, %s222
        %s224 = smul.addr %s223, 8
        %s225 = scalar_lea.vmem %s2, %s224
        %p226 = pneg %p131
        %p227 = pneg %p128
        %p228 = scmp.lt.s32.totalorder %s23, 1
        %s229 = scalar_select %p228, %s23, 1
        %p230 = scmp.lt.s32.totalorder %s24, 0
        %s231 = scalar_select %p230, %s24, 0
        %s232 = smul.addr %s231, 2
        %s233 = smul.addr %s229, 2
        %s234 = sadd.s32 %s232, %s233
        %s235 = smul.addr %s234, 8
        %s236 = scalar_lea.vmem %s3, %s235
        %s237 = smul.u32 2, %s24
        %p238 = scmp.lt.s32.totalorder %s23, 1
        %s239 = scalar_select %p238, %s23, 1
        %p240 = scmp.lt.s32.totalorder %s24, 0
        %s241 = scalar_select %p240, %s24, 0
        %s242 = smul.addr %s241, 2
        %s243 = smul.addr %s239, 2
        %s244 = sadd.s32 %s242, %s243
        %s245 = smul.addr %s244, 8
        %s246 = scalar_lea.vmem %s2, %s245
        %p247 = scmp.lt.s32.totalorder %s23, 1
        %s248 = scalar_select %p247, %s23, 1
        %p249 = scmp.lt.s32.totalorder %s24, 0
        %s250 = scalar_select %p249, %s24, 0
        %s251 = smul.addr %s250, 2
        %s252 = smul.addr %s248, 2
        %s253 = sadd.s32 %s251, %s252
        %s254 = smul.addr %s253, 8
        %s255 = scalar_lea.vmem %s3, %s254
        %v256 = vld [vmem:[%s197] sm:$0xff]
        %v257 = vld [vmem:[%s197 + $0x8] sm:$0xff]
        %v258 = vld [vmem:[%s197 + $0x10] sm:$0xff]
        %v259 = vld [vmem:[%s197 + $0x18] sm:$0xff]
        %v260 = vld [vmem:[#allocation4] sm:$0xff]
        %v261 = vld [vmem:[#allocation4 + $0x8] sm:$0xff]
        %vm262 = vcmask 130048
        %v264 = vsel %vm262, %v260, 0
        %v267 = vsel %vm262, %v261, 0
        %269 = vmatprep.subr.mxu0 %v257
        %270 = vmatpush1.msra.mxu0 %v256
        %271 = vmatprep.subr.mxu0 %v259
        %272 = vmatpush1.msra.mxu0 %v258
        %273 = vmatprep.subr.mxu0 0.0
        %274 = vmatpush1.msra.mxu0 0.0
        %275 = vmatprep.subr.mxu0 0.0
        %276 = vmatpush1.msra.mxu0 0.0
        %277 = vmatprep.subr.mxu0 0.0
        %278 = vmatpush1.msra.mxu0 0.0
        %279 = vmatprep.subr.mxu0 0.0
        %280 = vmatpush1.msra.mxu0 0.0
        %281 = vmatprep.subr.mxu0 0.0
        %282 = vmatpush1.msra.mxu0 0.0
        %283 = vmatprep.subr.mxu0 0.0
        %284 = vmatpush1.msra.mxu0 0.0
        %285 = vmatprep.subr.mxu0 0.0
        %286 = vmatpush1.msra.mxu0 0.0
        %287 = vmatprep.subr.mxu0 0.0
        %288 = vmatpush1.msra.mxu0 0.0
        %289 = vmatprep.subr.mxu0 0.0
        %290 = vmatpush1.msra.mxu0 0.0
        %291 = vmatprep.subr.mxu0 0.0
        %292 = vmatpush1.msra.mxu0 0.0
        %293 = vmatprep.subr.mxu0 0.0
        %294 = vmatpush1.msra.mxu0 0.0
        %295 = vmatprep.subr.mxu0 0.0
        %296 = vmatpush1.msra.mxu0 0.0
        %297 = vmatprep.subr.mxu0 0.0
        %298 = vmatpush1.msra.mxu0 0.0
        %299 = vmatprep.subr.mxu0 0.0
        %300 = vmatpush1.msra.mxu0 0.0
        %301 = vmatprep.subr.mxu0 0.0
        %302 = vmatpush1.msra.mxu0 0.0
        %303 = vmatprep.subr.mxu0 0.0
        %304 = vmatpush1.msra.mxu0 0.0
        %305 = vmatprep.subr.mxu0 0.0
        %306 = vmatpush1.msra.mxu0 0.0
        %307 = vmatprep.subr.mxu0 0.0
        %308 = vmatpush1.msra.mxu0 0.0
        %309 = vmatprep.subr.mxu0 0.0
        %310 = vmatpush1.msra.mxu0 0.0
        %311 = vmatprep.subr.mxu0 0.0
        %312 = vmatpush1.msra.mxu0 0.0
        %313 = vmatprep.subr.mxu0 0.0
        %314 = vmatpush1.msra.mxu0 0.0
        %315 = vmatprep.subr.mxu0 0.0
        %316 = vmatpush1.msra.mxu0 0.0
        %317 = vmatprep.subr.mxu0 0.0
        %318 = vmatpush1.msra.mxu0 0.0
        %319 = vmatprep.subr.mxu0 0.0
        %320 = vmatpush1.msra.mxu0 0.0
        %321 = vmatprep.subr.mxu0 0.0
        %322 = vmatpush1.msra.mxu0 0.0
        %323 = vmatprep.subr.mxu0 0.0
        %324 = vmatpush1.msra.mxu0 0.0
        %325 = vmatprep.subr.mxu0 0.0
        %326 = vmatpush1.msra.mxu0 0.0
        %327 = vmatprep.subr.mxu0 0.0
        %328 = vmatpush1.msra.mxu0 0.0
        %329 = vmatprep.subr.mxu0 0.0
        %330 = vmatpush1.msra.mxu0 0.0
        %331 = vmatprep.subr.mxu0 0.0
        %332 = vmatpush1.msra.mxu0 0.0
        %333 = vmatprep.mubr.f32.mxu0 0.0
        %334 = vmatmul.mubr.f32.gmra.mrb[0].mxu0 %v264
        %v335 = vpop.f32.mrb[0].mxu0
        %v336 = vadd.f32 0.0, %v335
        %v337 = vpop.f32.mrb[0].mxu0
        %v338 = vadd.f32 0.0, %v337
        %339 = vmatprep.mubr.f32.mxu0 0.0
        %340 = vmatmul.mubr.f32.gmra.mrb[0].mxu0 %v267
        %v341 = vpop.f32.mrb[0].mxu0
        %v342 = vadd.f32 0.0, %v341
        %v343 = vpop.f32.mrb[0].mxu0
        %v344 = vadd.f32 0.0, %v343
        %345 = vdwg.mxu0
        %v346 = vadd.f32 %v336, %v338
        %347 = vadd.xlane.f32.xlu0 %v346
        %v348 = vpop.xlane.xlu0 %347
        %v349 = vadd.f32 %v342, %v344
        %350 = vadd.xlane.f32.xlu0 %v349
        %v351 = vpop.xlane.xlu0 %350
        %vm352 = vcmask 7168
        %353 = vst.msk [vmem:[%s246] sm:$0xff] %vm352, %v348
        %354 = vst.msk [vmem:[%s246 + $0x8] sm:$0xff] %vm352, %v351
        %v355 = vmul.f32 %v336, %v336
        %v356 = vmul.f32 %v338, %v338
        %v357 = vmul.f32 %v342, %v342
        %v358 = vmul.f32 %v344, %v344
        %v359 = vadd.f32 %v355, %v356
        %360 = vadd.xlane.f32.xlu0 %v359
        %v361 = vpop.xlane.xlu0 %360
        %v362 = vadd.f32 %v357, %v358
        %363 = vadd.xlane.f32.xlu0 %v362
        %v364 = vpop.xlane.xlu0 %363
        %365 = vst.msk [vmem:[%s255] sm:$0xff] %vm352, %v361
        %366 = vst.msk [vmem:[%s255 + $0x8] sm:$0xff] %vm352, %v364
        %p367 = scmp.lt.s32.totalorder %s23, 1
        %s368 = scalar_select %p367, %s23, 1
        %p369 = scmp.lt.s32.totalorder %s24, 0
        %s370 = scalar_select %p369, %s24, 0
        %s371 = smul.addr %s370, 2
        %s372 = smul.addr %s368, 2
        %s373 = sadd.s32 %s371, %s372
        %s374 = smul.addr %s373, 8
        %s375 = scalar_lea.vmem %s2, %s374
        %p376 = scmp.lt.s32.totalorder %s23, 1
        %s377 = scalar_select %p376, %s23, 1
        %p378 = scmp.lt.s32.totalorder %s24, 0
        %s379 = scalar_select %p378, %s24, 0
        %s380 = smul.addr %s379, 2
        %s381 = smul.addr %s377, 2
        %s382 = sadd.s32 %s380, %s381
        %s383 = smul.addr %s382, 8
        %s384 = scalar_lea.vmem %s3, %s383
        // Predicated region
        $region37: #{conv_bn_relu_res1d.3} parent=27 // pred_check
          %p385 = pneg %p100
        $region38: #{conv_bn_relu_res1d.3} parent=27 // pred_check_branch
          %387 = sbr.rel (%p385) target = $region40
        $region39: #{conv_bn_relu_res1d.3} parent=27 // pred_region
          _
        $region40: #{conv_bn_relu_res1d.3} parent=27 // pred_fallthru
          _
        // Predicated region
        $region41: #{conv_bn_relu_res1d.3} parent=27 // pred_check
          %p388 = pneg %p128
        $region42: #{conv_bn_relu_res1d.3} parent=27 // pred_check_branch
          %390 = sbr.rel (%p388) target = $region44
        $region43: #{conv_bn_relu_res1d.3} parent=27 // pred_region
          _
        $region44: #{conv_bn_relu_res1d.3} parent=27 // pred_fallthru
          _
      $region28: #{conv_bn_relu_res1d.3} parent=5 // pred_fallthru
        _
      %p391 = scmp.le.s32.totalorder 2, %s14
      // Predicated region
      $region45: #{conv_bn_relu_res1d.3} parent=5 // pred_check
        %p392 = pneg %p391
      $region46: #{conv_bn_relu_res1d.3} parent=5 // pred_check_branch
        %394 = sbr.rel (%p392) target = $region48
      $region47: #{conv_bn_relu_res1d.3} parent=5 // pred_region
        %s395 = ssub.s32 %s14, 2
        // Predicated region
        $region49: #{conv_bn_relu_res1d.3} parent=47 // pred_check
          %p396 = pneg %p106
        $region50: #{conv_bn_relu_res1d.3} parent=47 // pred_check_branch
          %398 = sbr.rel (%p396) target = $region52
        $region51: #{conv_bn_relu_res1d.3} parent=47 // pred_region
          %p399 = scmp.lt.s32.totalorder %s25, 1
          %s400 = scalar_select %p399, %s25, 1
          %p401 = scmp.lt.s32.totalorder %s26, 0
          %s402 = scalar_select %p401, %s26, 0
          %s403 = smul.addr %s402, 2
          %s404 = smul.addr %s400, 2
          %s405 = sadd.s32 %s403, %s404
          %s406 = smul.addr %s405, 8
          %s407 = scalar_lea.vmem %s2, %s406
        $region52: #{conv_bn_relu_res1d.3} parent=47 // pred_fallthru
          _
        // Predicated region
        $region53: #{conv_bn_relu_res1d.3} parent=47 // pred_check
          %p408 = pneg %p134
        $region54: #{conv_bn_relu_res1d.3} parent=47 // pred_check_branch
          %410 = sbr.rel (%p408) target = $region56
        $region55: #{conv_bn_relu_res1d.3} parent=47 // pred_region
          %p411 = scmp.lt.s32.totalorder %s25, 1
          %s412 = scalar_select %p411, %s25, 1
          %p413 = scmp.lt.s32.totalorder %s26, 0
          %s414 = scalar_select %p413, %s26, 0
          %s415 = smul.addr %s414, 2
          %s416 = smul.addr %s412, 2
          %s417 = sadd.s32 %s415, %s416
          %s418 = smul.addr %s417, 8
          %s419 = scalar_lea.vmem %s3, %s418
        $region56: #{conv_bn_relu_res1d.3} parent=47 // pred_fallthru
          _
      $region48: #{conv_bn_relu_res1d.3} parent=5 // pred_fallthru
        _
    $region6: #{conv_bn_relu_res1d.3} parent=1 // loop_footer
      %s18 = sadd.s32 1, %s14
    $region7: #{conv_bn_relu_res1d.3} parent=1 // loop_footer_branch
      %13 = sbr.rel target = $region3
    $region8: #{conv_bn_relu_res1d.3} parent=1 // loop_exit
      _
    %420 = vsyncpa [#allocation3], 1
    %s421 = scalar_lea.sflag [#allocation3], 1
    %422 = vsyncpa %s421, 1
    %423 = vsyncpa [#allocation5], 1

// kernel: conv_bn_relu_res1d.4
$region0: #{conv_bn_relu_res1d.4}
  #allocation0 [shape = 'u32[]', space=smem, size = 0x4, offset = 0x4, fixed_abs, tag = 'smem constant byte address 0x4 - core index']
  #allocation1 [shape = 'u32[144,128]{1,0:T(1,128)}', space=vmem, size = 0x12000, scoped, tag = 'internal scratch']
  %s0 = inlined_call_operand.vmem [shape: f32[2,16,256], index: 0, kind: input, shape index: {}]
  %s1 = inlined_call_operand.vmem [shape: f32[16,16], index: 1, kind: input, shape index: {}]
  %s2 = inlined_call_operand.vmem [shape: f32[16,1], index: 2, kind: input, shape index: {}]
  %s3 = inlined_call_operand.vmem [shape: f32[16,1], index: 3, kind: input, shape index: {}]
  %s4 = inlined_call_operand.vmem [shape: f32[16,16], index: 4, kind: input, shape index: {}]
  %s5 = inlined_call_operand.vmem [shape: f32[2,1,16,1], index: 5, kind: output, shape index: {0}]
  %s6 = inlined_call_operand.vmem [shape: f32[2,1,16,1], index: 6, kind: output, shape index: {1}]
  %7 = xla_tuple %s5, %s6
  %s8 = sld [smem:[#allocation0]]
  $region61: #{conv_bn_relu_res1d.4} parent=0
    _
  %s10 = ssub.s32 1, %s8
  %s11 = scalar_select 0, %s10, %s8
  loop: start=0, step=1, limit=4
  $region2: #{conv_bn_relu_res1d.4} parent=0 // loop_pre_header
    _
  $region3: #{conv_bn_relu_res1d.4} parent=0 // loop_header
    %s13 = sphi 0, %s17
    %p14 = scmp.ge.s32.totalorder %s13, 4
    %s20 = sphi 0, %s32
    %s21 = sphi 0, %s28
    %s22 = sphi 0, %s20
    %s23 = sphi 0, %s21
    %s24 = sphi 0, %s22
    %s25 = sphi 0, %s23
    %s37 = sphi 0, %s39
    %s40 = sphi 0, %s37
    %s41 = sphi 0, %s40
    %s57 = sphi 0, %s41
    %s61 = sphi 0, %s61
    %s63 = sphi 0, %s61
    %s64 = sphi 0, %s63
    %s78 = sphi 0, %s64
    %s82 = sphi 0, %s82
    %s84 = sphi 0, %s82
    %s85 = sphi 0, %s84
    %s99 = sphi 0, %s85
    %s103 = sphi 0, %s103
    %s105 = sphi 0, %s103
    %s106 = sphi 0, %s105
    %s120 = sphi 0, %s106
    %s124 = sphi 0, %s124
    %s126 = sphi 0, %s124
    %s127 = sphi 0, %s126
    %s141 = sphi 0, %s127
    %s149 = sphi 0, %s151
    %s152 = sphi 0, %s149
    %s153 = sphi 0, %s152
    %s169 = sphi 0, %s153
    %s177 = sphi 0, %s179
    %s180 = sphi 0, %s177
    %s181 = sphi 0, %s180
    %s197 = sphi 0, %s181
  $region4: #{conv_bn_relu_res1d.4} parent=0 // loop_header_branch
    %16 = sbr.rel (%p14) target = $region8
  $region5: #{conv_bn_relu_res1d.4} parent=0 // loop_body
    %s18 = ssub.s32 %s13, 1
    %s19 = ssub.s32 %s13, 2
    %s26 = sadd.s32 1, %s21
    %p27 = scmp.ge.s32.totalorder %s26, 1
    %s28 = scalar_select %p27, 0, %s26
    %s29 = sadd.s32 1, %s20
    %s30 = scalar_select %p27, %s29, %s20
    %p31 = scmp.ge.s32.totalorder %s30, 2
    %s32 = scalar_select %p31, 0, %s30
    %s33 = ssub.s32 %s20, %s32
    %s34 = ssub.s32 %s21, %s28
    %s35 = sor.u32 %s33, %s34
    %p36 = scmp.eq.s32.totalorder %s35, 0
    %s38 = sadd.s32 %s37, 1
    %s39 = scalar_select %p36, %s37, %s38
    %p42 = pneg %p36
    %p43 = scmp.eq.s32.totalorder %s13, 1
    %p44 = por %p42, %p43
    %p45 = scmp.ne.s32.totalorder %s37, %s40
    %p46 = scmp.eq.s32.totalorder %s13, 0
    %p47 = por %p45, %p46
    %p48 = scmp.ne.s32.totalorder %s37, %s40
    %p49 = scmp.eq.s32.totalorder %s18, 1
    %p50 = por %p48, %p49
    %p51 = scmp.ne.s32.totalorder %s40, %s41
    %p52 = scmp.eq.s32.totalorder %s18, 0
    %p53 = por %p51, %p52
    %p54 = scmp.ne.s32.totalorder %s40, %s41
    %p55 = scmp.eq.s32.totalorder %s19, 1
    %p56 = por %p54, %p55
    %p58 = scmp.ne.s32.totalorder %s41, %s57
    %p59 = scmp.eq.s32.totalorder %s19, 0
    %p60 = por %p58, %p59
    %s62 = sadd.s32 %s61, 1
    %p65 = scmp.eq.s32.totalorder %s13, 1
    %p66 = scmp.ne.s32.totalorder %s61, %s63
    %p67 = scmp.eq.s32.totalorder %s13, 0
    %p68 = por %p66, %p67
    %p69 = scmp.ne.s32.totalorder %s61, %s63
    %p70 = scmp.eq.s32.totalorder %s18, 1
    %p71 = por %p69, %p70
    %p72 = scmp.ne.s32.totalorder %s63, %s64
    %p73 = scmp.eq.s32.totalorder %s18, 0
    %p74 = por %p72, %p73
    %p75 = scmp.ne.s32.totalorder %s63, %s64
    %p76 = scmp.eq.s32.totalorder %s19, 1
    %p77 = por %p75, %p76
    %p79 = scmp.ne.s32.totalorder %s64, %s78
    %p80 = scmp.eq.s32.totalorder %s19, 0
    %p81 = por %p79, %p80
    %s83 = sadd.s32 %s82, 1
    %p86 = scmp.eq.s32.totalorder %s13, 1
    %p87 = scmp.ne.s32.totalorder %s82, %s84
    %p88 = scmp.eq.s32.totalorder %s13, 0
    %p89 = por %p87, %p88
    %p90 = scmp.ne.s32.totalorder %s82, %s84
    %p91 = scmp.eq.s32.totalorder %s18, 1
    %p92 = por %p90, %p91
    %p93 = scmp.ne.s32.totalorder %s84, %s85
    %p94 = scmp.eq.s32.totalorder %s18, 0
    %p95 = por %p93, %p94
    %p96 = scmp.ne.s32.totalorder %s84, %s85
    %p97 = scmp.eq.s32.totalorder %s19, 1
    %p98 = por %p96, %p97
    %p100 = scmp.ne.s32.totalorder %s85, %s99
    %p101 = scmp.eq.s32.totalorder %s19, 0
    %p102 = por %p100, %p101
    %s104 = sadd.s32 %s103, 1
    %p107 = scmp.eq.s32.totalorder %s13, 1
    %p108 = scmp.ne.s32.totalorder %s103, %s105
    %p109 = scmp.eq.s32.totalorder %s13, 0
    %p110 = por %p108, %p109
    %p111 = scmp.ne.s32.totalorder %s103, %s105
    %p112 = scmp.eq.s32.totalorder %s18, 1
    %p113 = por %p111, %p112
    %p114 = scmp.ne.s32.totalorder %s105, %s106
    %p115 = scmp.eq.s32.totalorder %s18, 0
    %p116 = por %p114, %p115
    %p117 = scmp.ne.s32.totalorder %s105, %s106
    %p118 = scmp.eq.s32.totalorder %s19, 1
    %p119 = por %p117, %p118
    %p121 = scmp.ne.s32.totalorder %s106, %s120
    %p122 = scmp.eq.s32.totalorder %s19, 0
    %p123 = por %p121, %p122
    %s125 = sadd.s32 %s124, 1
    %p128 = scmp.eq.s32.totalorder %s13, 1
    %p129 = scmp.ne.s32.totalorder %s124, %s126
    %p130 = scmp.eq.s32.totalorder %s13, 0
    %p131 = por %p129, %p130
    %p132 = scmp.ne.s32.totalorder %s124, %s126
    %p133 = scmp.eq.s32.totalorder %s18, 1
    %p134 = por %p132, %p133
    %p135 = scmp.ne.s32.totalorder %s126, %s127
    %p136 = scmp.eq.s32.totalorder %s18, 0
    %p137 = por %p135, %p136
    %p138 = scmp.ne.s32.totalorder %s126, %s127
    %p139 = scmp.eq.s32.totalorder %s19, 1
    %p140 = por %p138, %p139
    %p142 = scmp.ne.s32.totalorder %s127, %s141
    %p143 = scmp.eq.s32.totalorder %s19, 0
    %p144 = por %p142, %p143
    %s145 = ssub.s32 %s20, %s32
    %s146 = ssub.s32 %s21, %s28
    %s147 = sor.u32 %s145, %s146
    %p148 = scmp.eq.s32.totalorder %s147, 0
    %s150 = sadd.s32 %s149, 1
    %s151 = scalar_select %p148, %s149, %s150
    %p154 = pneg %p148
    %p155 = scmp.eq.s32.totalorder %s13, 1
    %p156 = por %p154, %p155
    %p157 = scmp.ne.s32.totalorder %s149, %s152
    %p158 = scmp.eq.s32.totalorder %s13, 0
    %p159 = por %p157, %p158
    %p160 = scmp.ne.s32.totalorder %s149, %s152
    %p161 = scmp.eq.s32.totalorder %s18, 1
    %p162 = por %p160, %p161
    %p163 = scmp.ne.s32.totalorder %s152, %s153
    %p164 = scmp.eq.s32.totalorder %s18, 0
    %p165 = por %p163, %p164
    %p166 = scmp.ne.s32.totalorder %s152, %s153
    %p167 = scmp.eq.s32.totalorder %s19, 1
    %p168 = por %p166, %p167
    %p170 = scmp.ne.s32.totalorder %s153, %s169
    %p171 = scmp.eq.s32.totalorder %s19, 0
    %p172 = por %p170, %p171
    %s173 = ssub.s32 %s20, %s32
    %s174 = ssub.s32 %s21, %s28
    %s175 = sor.u32 %s173, %s174
    %p176 = scmp.eq.s32.totalorder %s175, 0
    %s178 = sadd.s32 %s177, 1
    %s179 = scalar_select %p176, %s177, %s178
    %p182 = pneg %p176
    %p183 = scmp.eq.s32.totalorder %s13, 1
    %p184 = por %p182, %p183
    %p185 = scmp.ne.s32.totalorder %s177, %s180
    %p186 = scmp.eq.s32.totalorder %s13, 0
    %p187 = por %p185, %p186
    %p188 = scmp.ne.s32.totalorder %s177, %s180
    %p189 = scmp.eq.s32.totalorder %s18, 1
    %p190 = por %p188, %p189
    %p191 = scmp.ne.s32.totalorder %s180, %s181
    %p192 = scmp.eq.s32.totalorder %s18, 0
    %p193 = por %p191, %p192
    %p194 = scmp.ne.s32.totalorder %s180, %s181
    %p195 = scmp.eq.s32.totalorder %s19, 1
    %p196 = por %p194, %p195
    %p198 = scmp.ne.s32.totalorder %s181, %s197
    %p199 = scmp.eq.s32.totalorder %s19, 0
    %p200 = por %p198, %p199
    %p201 = scmp.le.s32.totalorder 1, %s13
    %p202 = scmp.lt.s32.totalorder %s13, 3
    %p203 = pnand %p201, %p202
    %p204 = pneg %p203
    // Predicated region
    $region9: #{conv_bn_relu_res1d.4} parent=5 // pred_check
      _
    $region10: #{conv_bn_relu_res1d.4} parent=5 // pred_check_branch
      %206 = sbr.rel (%p203) target = $region12
    $region11: #{conv_bn_relu_res1d.4} parent=5 // pred_region
      %s207 = ssub.s32 %s13, 1
      // Predicated region
      $region13: #{conv_bn_relu_res1d.4} parent=11 // pred_check
        %p208 = pneg %p74
      $region14: #{conv_bn_relu_res1d.4} parent=11 // pred_check_branch
        %210 = sbr.rel (%p208) target = $region16
      $region15: #{conv_bn_relu_res1d.4} parent=11 // pred_region
        _
      $region16: #{conv_bn_relu_res1d.4} parent=11 // pred_fallthru
        _
      // Predicated region
      $region17: #{conv_bn_relu_res1d.4} parent=11 // pred_check
        %p211 = pneg %p95
      $region18: #{conv_bn_relu_res1d.4} parent=11 // pred_check_branch
        %213 = sbr.rel (%p211) target = $region20
      $region19: #{conv_bn_relu_res1d.4} parent=11 // pred_region
        _
      $region20: #{conv_bn_relu_res1d.4} parent=11 // pred_fallthru
        _
      // Predicated region
      $region21: #{conv_bn_relu_res1d.4} parent=11 // pred_check
        %p214 = pneg %p116
      $region22: #{conv_bn_relu_res1d.4} parent=11 // pred_check_branch
        %216 = sbr.rel (%p214) target = $region24
      $region23: #{conv_bn_relu_res1d.4} parent=11 // pred_region
        _
      $region24: #{conv_bn_relu_res1d.4} parent=11 // pred_fallthru
        _
      // Predicated region
      $region25: #{conv_bn_relu_res1d.4} parent=11 // pred_check
        %p217 = pneg %p137
      $region26: #{conv_bn_relu_res1d.4} parent=11 // pred_check_branch
        %219 = sbr.rel (%p217) target = $region28
      $region27: #{conv_bn_relu_res1d.4} parent=11 // pred_region
        _
      $region28: #{conv_bn_relu_res1d.4} parent=11 // pred_fallthru
        _
    $region12: #{conv_bn_relu_res1d.4} parent=5 // pred_fallthru
      _
    %p220 = scmp.lt.s32.totalorder %s13, 2
    // Predicated region
    $region29: #{conv_bn_relu_res1d.4} parent=5 // pred_check
      %p221 = pneg %p220
    $region30: #{conv_bn_relu_res1d.4} parent=5 // pred_check_branch
      %223 = sbr.rel (%p221) target = $region32
    $region31: #{conv_bn_relu_res1d.4} parent=5 // pred_region
      // Predicated region
      $region33: #{conv_bn_relu_res1d.4} parent=31 // pred_check
        %p224 = pneg %p47
      $region34: #{conv_bn_relu_res1d.4} parent=31 // pred_check_branch
        %226 = sbr.rel (%p224) target = $region36
      $region35: #{conv_bn_relu_res1d.4} parent=31 // pred_region
        %s227 = smul.u32 2, %s21
        %p228 = scmp.lt.s32.totalorder %s20, 1
        %s229 = scalar_select %p228, %s20, 1
        %p230 = scmp.lt.s32.totalorder %s227, 1
        %s231 = scalar_select %p230, %s227, 1
        %s232 = smul.addr %s229, 4
        %s233 = sadd.s32 %s231, %s232
        %s234 = smul.addr %s233, 8
        %s235 = scalar_lea.vmem %s0, %s234
        %s236 = smul.u32 2, %s21
      $region36: #{conv_bn_relu_res1d.4} parent=31 // pred_fallthru
        _
    $region32: #{conv_bn_relu_res1d.4} parent=5 // pred_fallthru
      _
    %p237 = scmp.le.s32.totalorder 1, %s13
    %p238 = scmp.lt.s32.totalorder %s13, 3
    %p239 = pnand %p237, %p238
    %p240 = pneg %p239
    // Predicated region
    $region37: #{conv_bn_relu_res1d.4} parent=5 // pred_check
      _
    $region38: #{conv_bn_relu_res1d.4} parent=5 // pred_check_branch
      %242 = sbr.rel (%p239) target = $region40
    $region39: #{conv_bn_relu_res1d.4} parent=5 // pred_region
      %s243 = ssub.s32 %s13, 1
      %s244 = smul.u32 2, %s23
      %p245 = scmp.lt.s32.totalorder %s22, 1
      %s246 = scalar_select %p245, %s22, 1
      %p247 = scmp.lt.s32.totalorder %s244, 1
      %s248 = scalar_select %p247, %s244, 1
      %s249 = smul.addr %s246, 4
      %s250 = sadd.s32 %s248, %s249
      %s251 = smul.addr %s250, 8
      %s252 = scalar_lea.vmem %s0, %s251
      %p253 = pneg %p53
      %p254 = pneg %p50
      %p255 = pneg %p74
      %p256 = pneg %p71
      %p257 = pneg %p95
      %p258 = pneg %p92
      %p259 = pneg %p116
      %p260 = pneg %p113
      %p261 = pneg %p137
      %p262 = pneg %p134
      %p263 = pneg %p165
      %p264 = pneg %p162
      %p265 = scmp.lt.s32.totalorder %s22, 1
      %s266 = scalar_select %p265, %s22, 1
      %p267 = scmp.lt.s32.totalorder %s23, 0
      %s268 = scalar_select %p267, %s23, 0
      %s269 = smul.addr %s268, 2
      %s270 = smul.addr %s266, 2
      %s271 = sadd.s32 %s269, %s270
      %s272 = smul.addr %s271, 8
      %s273 = scalar_lea.vmem %s5, %s272
      %p274 = pneg %p193
      %p275 = pneg %p190
      %p276 = scmp.lt.s32.totalorder %s22, 1
      %s277 = scalar_select %p276, %s22, 1
      %p278 = scmp.lt.s32.totalorder %s23, 0
      %s279 = scalar_select %p278, %s23, 0
      %s280 = smul.addr %s279, 2
      %s281 = smul.addr %s277, 2
      %s282 = sadd.s32 %s280, %s281
      %s283 = smul.addr %s282, 8
      %s284 = scalar_lea.vmem %s6, %s283
      %s285 = smul.u32 2, %s23
      %p286 = scmp.lt.s32.totalorder %s22, 1
      %s287 = scalar_select %p286, %s22, 1
      %p288 = scmp.lt.s32.totalorder %s285, 1
      %s289 = scalar_select %p288, %s285, 1
      %s290 = smul.addr %s287, 4
      %s291 = sadd.s32 %s289, %s290
      %s292 = smul.addr %s291, 8
      %s293 = scalar_lea.vmem %s0, %s292
      %s294 = smul.u32 2, %s23
      %p295 = scmp.lt.s32.totalorder %s22, 1
      %s296 = scalar_select %p295, %s22, 1
      %p297 = scmp.lt.s32.totalorder %s23, 0
      %s298 = scalar_select %p297, %s23, 0
      %s299 = smul.addr %s298, 2
      %s300 = smul.addr %s296, 2
      %s301 = sadd.s32 %s299, %s300
      %s302 = smul.addr %s301, 8
      %s303 = scalar_lea.vmem %s5, %s302
      %p304 = scmp.lt.s32.totalorder %s22, 1
      %s305 = scalar_select %p304, %s22, 1
      %p306 = scmp.lt.s32.totalorder %s23, 0
      %s307 = scalar_select %p306, %s23, 0
      %s308 = smul.addr %s307, 2
      %s309 = smul.addr %s305, 2
      %s310 = sadd.s32 %s308, %s309
      %s311 = smul.addr %s310, 8
      %s312 = scalar_lea.vmem %s6, %s311
      %v313 = vld [vmem:[%s293] sm:$0xff]
      %v314 = vld [vmem:[%s293 + $0x8] sm:$0xff]
      %v315 = vld [vmem:[%s293 + $0x10] sm:$0xff]
      %v316 = vld [vmem:[%s293 + $0x18] sm:$0xff]
      %v317 = vld [vmem:[%s1] sm:$0xff]
      %v318 = vld [vmem:[%s1 + $0x8] sm:$0xff]
      %vm319 = vcmask 130048
      %v321 = vsel %vm319, %v317, 0
      %v324 = vsel %vm319, %v318, 0
      %326 = vmatprep.subr.mxu0 %v314
      %327 = vmatpush1.msra.mxu0 %v313
      %328 = vmatprep.subr.mxu0 %v316
      %329 = vmatpush1.msra.mxu0 %v315
      %330 = vmatprep.subr.mxu0 0.0
      %331 = vmatpush1.msra.mxu0 0.0
      %332 = vmatprep.subr.mxu0 0.0
      %333 = vmatpush1.msra.mxu0 0.0
      %334 = vmatprep.subr.mxu0 0.0
      %335 = vmatpush1.msra.mxu0 0.0
      %336 = vmatprep.subr.mxu0 0.0
      %337 = vmatpush1.msra.mxu0 0.0
      %338 = vmatprep.subr.mxu0 0.0
      %339 = vmatpush1.msra.mxu0 0.0
      %340 = vmatprep.subr.mxu0 0.0
      %341 = vmatpush1.msra.mxu0 0.0
      %342 = vmatprep.subr.mxu0 0.0
      %343 = vmatpush1.msra.mxu0 0.0
      %344 = vmatprep.subr.mxu0 0.0
      %345 = vmatpush1.msra.mxu0 0.0
      %346 = vmatprep.subr.mxu0 0.0
      %347 = vmatpush1.msra.mxu0 0.0
      %348 = vmatprep.subr.mxu0 0.0
      %349 = vmatpush1.msra.mxu0 0.0
      %350 = vmatprep.subr.mxu0 0.0
      %351 = vmatpush1.msra.mxu0 0.0
      %352 = vmatprep.subr.mxu0 0.0
      %353 = vmatpush1.msra.mxu0 0.0
      %354 = vmatprep.subr.mxu0 0.0
      %355 = vmatpush1.msra.mxu0 0.0
      %356 = vmatprep.subr.mxu0 0.0
      %357 = vmatpush1.msra.mxu0 0.0
      %358 = vmatprep.subr.mxu0 0.0
      %359 = vmatpush1.msra.mxu0 0.0
      %360 = vmatprep.subr.mxu0 0.0
      %361 = vmatpush1.msra.mxu0 0.0
      %362 = vmatprep.subr.mxu0 0.0
      %363 = vmatpush1.msra.mxu0 0.0
      %364 = vmatprep.subr.mxu0 0.0
      %365 = vmatpush1.msra.mxu0 0.0
      %366 = vmatprep.subr.mxu0 0.0
      %367 = vmatpush1.msra.mxu0 0.0
      %368 = vmatprep.subr.mxu0 0.0
      %369 = vmatpush1.msra.mxu0 0.0
      %370 = vmatprep.subr.mxu0 0.0
      %371 = vmatpush1.msra.mxu0 0.0
      %372 = vmatprep.subr.mxu0 0.0
      %373 = vmatpush1.msra.mxu0 0.0
      %374 = vmatprep.subr.mxu0 0.0
      %375 = vmatpush1.msra.mxu0 0.0
      %376 = vmatprep.subr.mxu0 0.0
      %377 = vmatpush1.msra.mxu0 0.0
      %378 = vmatprep.subr.mxu0 0.0
      %379 = vmatpush1.msra.mxu0 0.0
      %380 = vmatprep.subr.mxu0 0.0
      %381 = vmatpush1.msra.mxu0 0.0
      %382 = vmatprep.subr.mxu0 0.0
      %383 = vmatpush1.msra.mxu0 0.0
      %384 = vmatprep.subr.mxu0 0.0
      %385 = vmatpush1.msra.mxu0 0.0
      %386 = vmatprep.subr.mxu0 0.0
      %387 = vmatpush1.msra.mxu0 0.0
      %388 = vmatprep.subr.mxu0 0.0
      %389 = vmatpush1.msra.mxu0 0.0
      %390 = vmatprep.mubr.f32.mxu0 0.0
      %391 = vmatmul.mubr.f32.gmra.mrb[0].mxu0 %v321
      %v392 = vpop.f32.mrb[0].mxu0
      %v393 = vadd.f32 0.0, %v392
      %v394 = vpop.f32.mrb[0].mxu0
      %v395 = vadd.f32 0.0, %v394
      %396 = vmatprep.mubr.f32.mxu0 0.0
      %397 = vmatmul.mubr.f32.gmra.mrb[0].mxu0 %v324
      %v398 = vpop.f32.mrb[0].mxu0
      %v399 = vadd.f32 0.0, %v398
      %v400 = vpop.f32.mrb[0].mxu0
      %v401 = vadd.f32 0.0, %v400
      %402 = vdwg.mxu0
      %v403 = vld [vmem:[%s2] sm:$0xff]
      %v404 = vld [vmem:[%s2 + $0x8] sm:$0xff]
      %406 = vset.pattern.permute.xlu0 0
      %407 = vperm.xlu0 %406, %v403
      %v408 = vpop.permute.xlu0 %407
      %411 = vset.pattern.permute.xlu0 0
      %412 = vperm.xlu0 %411, %v404
      %v413 = vpop.permute.xlu0 %412
      %v415 = vmul.f32 %v393, %v408
      %v416 = vmul.f32 %v395, %v408
      %v417 = vmul.f32 %v399, %v413
      %v418 = vmul.f32 %v401, %v413
      %v419 = vld [vmem:[%s3] sm:$0xff]
      %v420 = vld [vmem:[%s3 + $0x8] sm:$0xff]
      %422 = vset.pattern.permute.xlu0 0
      %423 = vperm.xlu0 %422, %v419
      %v424 = vpop.permute.xlu0 %423
      %427 = vset.pattern.permute.xlu0 0
      %428 = vperm.xlu0 %427, %v420
      %v429 = vpop.permute.xlu0 %428
      %v431 = vadd.f32 %v415, %v424
      %v432 = vadd.f32 %v416, %v424
      %v433 = vadd.f32 %v417, %v429
      %v434 = vadd.f32 %v418, %v429
      %v435 = vmul.f32 %v431, 0.5
      %v436 = vmul.f32 %v432, 0.5
      %v437 = vmul.f32 %v433, 0.5
      %v438 = vmul.f32 %v434, 0.5
      %v439 = vmul.f32 %v431, 0.70710677
      %v440 = vmul.f32 %v432, 0.70710677
      %v441 = vmul.f32 %v433, 0.70710677
      %v442 = vmul.f32 %v434, 0.70710677
      %v443 = verf.f32.pop %v439
      %v444 = verf.f32.pop %v440
      %v445 = verf.f32.pop %v441
      %v446 = verf.f32.pop %v442
      %v447 = vadd.f32 %v443, 1.0
      %v448 = vadd.f32 %v444, 1.0
      %v449 = vadd.f32 %v445, 1.0
      %v450 = vadd.f32 %v446, 1.0
      %v451 = vmul.f32 %v435, %v447
      %v452 = vmul.f32 %v436, %v448
      %v453 = vmul.f32 %v437, %v449
      %v454 = vmul.f32 %v438, %v450
      %v455 = vld [vmem:[%s4] sm:$0xff]
      %v456 = vld [vmem:[%s4 + $0x8] sm:$0xff]
      %v458 = vsel %vm319, %v455, 0
      %v461 = vsel %vm319, %v456, 0
      %463 = vmatprep.subr.mxu0 %v452
      %464 = vmatpush1.msra.mxu0 %v451
      %465 = vmatprep.subr.mxu0 %v454
      %466 = vmatpush1.msra.mxu0 %v453
      %467 = vmatprep.subr.mxu0 0.0
      %468 = vmatpush1.msra.mxu0 0.0
      %469 = vmatprep.subr.mxu0 0.0
      %470 = vmatpush1.msra.mxu0 0.0
      %471 = vmatprep.subr.mxu0 0.0
      %472 = vmatpush1.msra.mxu0 0.0
      %473 = vmatprep.subr.mxu0 0.0
      %474 = vmatpush1.msra.mxu0 0.0
      %475 = vmatprep.subr.mxu0 0.0
      %476 = vmatpush1.msra.mxu0 0.0
      %477 = vmatprep.subr.mxu0 0.0
      %478 = vmatpush1.msra.mxu0 0.0
      %479 = vmatprep.subr.mxu0 0.0
      %480 = vmatpush1.msra.mxu0 0.0
      %481 = vmatprep.subr.mxu0 0.0
      %482 = vmatpush1.msra.mxu0 0.0
      %483 = vmatprep.subr.mxu0 0.0
      %484 = vmatpush1.msra.mxu0 0.0
      %485 = vmatprep.subr.mxu0 0.0
      %486 = vmatpush1.msra.mxu0 0.0
      %487 = vmatprep.subr.mxu0 0.0
      %488 = vmatpush1.msra.mxu0 0.0
      %489 = vmatprep.subr.mxu0 0.0
      %490 = vmatpush1.msra.mxu0 0.0
      %491 = vmatprep.subr.mxu0 0.0
      %492 = vmatpush1.msra.mxu0 0.0
      %493 = vmatprep.subr.mxu0 0.0
      %494 = vmatpush1.msra.mxu0 0.0
      %495 = vmatprep.subr.mxu0 0.0
      %496 = vmatpush1.msra.mxu0 0.0
      %497 = vmatprep.subr.mxu0 0.0
      %498 = vmatpush1.msra.mxu0 0.0
      %499 = vmatprep.subr.mxu0 0.0
      %500 = vmatpush1.msra.mxu0 0.0
      %501 = vmatprep.subr.mxu0 0.0
      %502 = vmatpush1.msra.mxu0 0.0
      %503 = vmatprep.subr.mxu0 0.0
      %504 = vmatpush1.msra.mxu0 0.0
      %505 = vmatprep.subr.mxu0 0.0
      %506 = vmatpush1.msra.mxu0 0.0
      %507 = vmatprep.subr.mxu0 0.0
      %508 = vmatpush1.msra.mxu0 0.0
      %509 = vmatprep.subr.mxu0 0.0
      %510 = vmatpush1.msra.mxu0 0.0
      %511 = vmatprep.subr.mxu0 0.0
      %512 = vmatpush1.msra.mxu0 0.0
      %513 = vmatprep.subr.mxu0 0.0
      %514 = vmatpush1.msra.mxu0 0.0
      %515 = vmatprep.subr.mxu0 0.0
      %516 = vmatpush1.msra.mxu0 0.0
      %517 = vmatprep.subr.mxu0 0.0
      %518 = vmatpush1.msra.mxu0 0.0
      %519 = vmatprep.subr.mxu0 0.0
      %520 = vmatpush1.msra.mxu0 0.0
      %521 = vmatprep.subr.mxu0 0.0
      %522 = vmatpush1.msra.mxu0 0.0
      %523 = vmatprep.subr.mxu0 0.0
      %524 = vmatpush1.msra.mxu0 0.0
      %525 = vmatprep.subr.mxu0 0.0
      %526 = vmatpush1.msra.mxu0 0.0
      %527 = vmatprep.mubr.f32.mxu0 0.0
      %528 = vmatmul.mubr.f32.gmra.mrb[0].mxu0 %v458
      %v529 = vpop.f32.mrb[0].mxu0
      %v530 = vadd.f32 0.0, %v529
      %v531 = vpop.f32.mrb[0].mxu0
      %v532 = vadd.f32 0.0, %v531
      %533 = vmatprep.mubr.f32.mxu0 0.0
      %534 = vmatmul.mubr.f32.gmra.mrb[0].mxu0 %v461
      %v535 = vpop.f32.mrb[0].mxu0
      %v536 = vadd.f32 0.0, %v535
      %v537 = vpop.f32.mrb[0].mxu0
      %v538 = vadd.f32 0.0, %v537
      %539 = vdwg.mxu0
      %v540 = vadd.f32 %v530, %v532
      %541 = vadd.xlane.f32.xlu0 %v540
      %v542 = vpop.xlane.xlu0 %541
      %v543 = vadd.f32 %v536, %v538
      %544 = vadd.xlane.f32.xlu0 %v543
      %v545 = vpop.xlane.xlu0 %544
      %vm546 = vcmask 7168
      %547 = vst.msk [vmem:[%s303] sm:$0xff] %vm546, %v542
      %548 = vst.msk [vmem:[%s303 + $0x8] sm:$0xff] %vm546, %v545
      %v549 = vmul.f32 %v530, %v530
      %v550 = vmul.f32 %v532, %v532
      %v551 = vmul.f32 %v536, %v536
      %v552 = vmul.f32 %v538, %v538
      %v553 = vadd.f32 %v549, %v550
      %554 = vadd.xlane.f32.xlu0 %v553
      %v555 = vpop.xlane.xlu0 %554
      %v556 = vadd.f32 %v551, %v552
      %557 = vadd.xlane.f32.xlu0 %v556
      %v558 = vpop.xlane.xlu0 %557
      %559 = vst.msk [vmem:[%s312] sm:$0xff] %vm546, %v555
      %560 = vst.msk [vmem:[%s312 + $0x8] sm:$0xff] %vm546, %v558
      %p561 = scmp.lt.s32.totalorder %s22, 1
      %s562 = scalar_select %p561, %s22, 1
      %p563 = scmp.lt.s32.totalorder %s23, 0
      %s564 = scalar_select %p563, %s23, 0
      %s565 = smul.addr %s564, 2
      %s566 = smul.addr %s562, 2
      %s567 = sadd.s32 %s565, %s566
      %s568 = smul.addr %s567, 8
      %s569 = scalar_lea.vmem %s5, %s568
      %p570 = scmp.lt.s32.totalorder %s22, 1
      %s571 = scalar_select %p570, %s22, 1
      %p572 = scmp.lt.s32.totalorder %s23, 0
      %s573 = scalar_select %p572, %s23, 0
      %s574 = smul.addr %s573, 2
      %s575 = smul.addr %s571, 2
      %s576 = sadd.s32 %s574, %s575
      %s577 = smul.addr %s576, 8
      %s578 = scalar_lea.vmem %s6, %s577
      // Predicated region
      $region41: #{conv_bn_relu_res1d.4} parent=39 // pred_check
        %p579 = pneg %p162
      $region42: #{conv_bn_relu_res1d.4} parent=39 // pred_check_branch
        %581 = sbr.rel (%p579) target = $region44
      $region43: #{conv_bn_relu_res1d.4} parent=39 // pred_region
        _
      $region44: #{conv_bn_relu_res1d.4} parent=39 // pred_fallthru
        _
      // Predicated region
      $region45: #{conv_bn_relu_res1d.4} parent=39 // pred_check
        %p582 = pneg %p190
      $region46: #{conv_bn_relu_res1d.4} parent=39 // pred_check_branch
        %584 = sbr.rel (%p582) target = $region48
      $region47: #{conv_bn_relu_res1d.4} parent=39 // pred_region
        _
      $region48: #{conv_bn_relu_res1d.4} parent=39 // pred_fallthru
        _
    $region40: #{conv_bn_relu_res1d.4} parent=5 // pred_fallthru
      _
    %p585 = scmp.le.s32.totalorder 2, %s13
    // Predicated region
    $region49: #{conv_bn_relu_res1d.4} parent=5 // pred_check
      %p586 = pneg %p585
    $region50: #{conv_bn_relu_res1d.4} parent=5 // pred_check_branch
      %588 = sbr.rel (%p586) target = $region52
    $region51: #{conv_bn_relu_res1d.4} parent=5 // pred_region
      %s589 = ssub.s32 %s13, 2
      // Predicated region
      $region53: #{conv_bn_relu_res1d.4} parent=51 // pred_check
        %p590 = pneg %p168
      $region54: #{conv_bn_relu_res1d.4} parent=51 // pred_check_branch
        %592 = sbr.rel (%p590) target = $region56
      $region55: #{conv_bn_relu_res1d.4} parent=51 // pred_region
        %p593 = scmp.lt.s32.totalorder %s24, 1
        %s594 = scalar_select %p593, %s24, 1
        %p595 = scmp.lt.s32.totalorder %s25, 0
        %s596 = scalar_select %p595, %s25, 0
        %s597 = smul.addr %s596, 2
        %s598 = smul.addr %s594, 2
        %s599 = sadd.s32 %s597, %s598
        %s600 = smul.addr %s599, 8
        %s601 = scalar_lea.vmem %s5, %s600
      $region56: #{conv_bn_relu_res1d.4} parent=51 // pred_fallthru
        _
      // Predicated region
      $region57: #{conv_bn_relu_res1d.4} parent=51 // pred_check
        %p602 = pneg %p196
      $region58: #{conv_bn_relu_res1d.4} parent=51 // pred_check_branch
        %604 = sbr.rel (%p602) target = $region60
      $region59: #{conv_bn_relu_res1d.4} parent=51 // pred_region
        %p605 = scmp.lt.s32.totalorder %s24, 1
        %s606 = scalar_select %p605, %s24, 1
        %p607 = scmp.lt.s32.totalorder %s25, 0
        %s608 = scalar_select %p607, %s25, 0
        %s609 = smul.addr %s608, 2
        %s610 = smul.addr %s606, 2
        %s611 = sadd.s32 %s609, %s610
        %s612 = smul.addr %s611, 8
        %s613 = scalar_lea.vmem %s6, %s612
      $region60: #{conv_bn_relu_res1d.4} parent=51 // pred_fallthru
        _
    $region52: #{conv_bn_relu_res1d.4} parent=5 // pred_fallthru
      _
  $region6: #{conv_bn_relu_res1d.4} parent=0 // loop_footer
    %s17 = sadd.s32 1, %s13
  $region7: #{conv_bn_relu_res1d.4} parent=0 // loop_footer_branch
    %12 = sbr.rel target = $region3
  $region8: #{conv_bn_relu_res1d.4} parent=0 // loop_exit
    _

// kernel: conv_bn_relu_res1d.5
$region0: #{conv_bn_relu_res1d.5}
  #allocation0 [shape = 'u32[]', space=smem, size = 0x4, offset = 0x4, fixed_abs, tag = 'smem constant byte address 0x4 - core index']
  #allocation1 [shape = 'u32[144,128]{1,0:T(1,128)}', space=vmem, size = 0x12000, scoped, tag = 'internal scratch']
  %s0 = inlined_call_operand.vmem [shape: f32[2,16,256], index: 0, kind: input, shape index: {}]
  %s1 = inlined_call_operand.vmem [shape: f32[16,16], index: 1, kind: input, shape index: {}]
  %s2 = inlined_call_operand.vmem [shape: f32[16,1], index: 2, kind: input, shape index: {}]
  %s3 = inlined_call_operand.vmem [shape: f32[16,1], index: 3, kind: input, shape index: {}]
  %s4 = inlined_call_operand.vmem [shape: f32[16,16], index: 4, kind: input, shape index: {}]
  %s5 = inlined_call_operand.vmem [shape: f32[16,1], index: 5, kind: input, shape index: {}]
  %s6 = inlined_call_operand.vmem [shape: f32[16,1], index: 6, kind: input, shape index: {}]
  %s7 = inlined_call_operand.hbm [shape: f32[2,16,256], index: 7, kind: output, shape index: {}]
  %s8 = sld [smem:[#allocation0]]
  $region61: #{conv_bn_relu_res1d.5} parent=0
    _
  %s10 = ssub.s32 1, %s8
  %s11 = scalar_select 0, %s10, %s8
  $region1: #{conv_bn_relu_res1d.5} parent=0
    #allocation2 [shape = 'u8[32768]{0}', space=vmem, size = 0x8000, scoped, tag = 'output window, operand 0']
    #allocation3 [shape = 's32[2]{0}', space=sflag, size = 0x8, scoped, tag = 'scoped memory for conv_bn_relu_res1d.5']
    %12 = vsyncpa [#allocation3], 0
    %s13 = scalar_lea.sflag [#allocation3], 1
    %14 = vsyncpa %s13, 0
    loop: start=0, step=1, limit=4
    $region2: #{conv_bn_relu_res1d.5} parent=1 // loop_pre_header
      _
    $region3: #{conv_bn_relu_res1d.5} parent=1 // loop_header
      %s16 = sphi 0, %s20
      %p17 = scmp.ge.s32.totalorder %s16, 4
      %s23 = sphi 0, %s35
      %s24 = sphi 0, %s31
      %s25 = sphi 0, %s23
      %s26 = sphi 0, %s24
      %s27 = sphi 0, %s25
      %s28 = sphi 0, %s26
      %s40 = sphi 0, %s42
      %s43 = sphi 0, %s40
      %s44 = sphi 0, %s43
      %s60 = sphi 0, %s44
      %s64 = sphi 0, %s64
      %s66 = sphi 0, %s64
      %s67 = sphi 0, %s66
      %s81 = sphi 0, %s67
      %s85 = sphi 0, %s85
      %s87 = sphi 0, %s85
      %s88 = sphi 0, %s87
      %s102 = sphi 0, %s88
      %s106 = sphi 0, %s106
      %s108 = sphi 0, %s106
      %s109 = sphi 0, %s108
      %s123 = sphi 0, %s109
      %s127 = sphi 0, %s127
      %s129 = sphi 0, %s127
      %s130 = sphi 0, %s129
      %s144 = sphi 0, %s130
      %s148 = sphi 0, %s148
      %s150 = sphi 0, %s148
      %s151 = sphi 0, %s150
      %s165 = sphi 0, %s151
      %s169 = sphi 0, %s169
      %s171 = sphi 0, %s169
      %s172 = sphi 0, %s171
      %s186 = sphi 0, %s172
      %s194 = sphi 0, %s196
      %s197 = sphi 0, %s194
      %s198 = sphi 0, %s197
      %s214 = sphi 0, %s198
    $region4: #{conv_bn_relu_res1d.5} parent=1 // loop_header_branch
      %19 = sbr.rel (%p17) target = $region8
    $region5: #{conv_bn_relu_res1d.5} parent=1 // loop_body
      %s21 = ssub.s32 %s16, 1
      %s22 = ssub.s32 %s16, 2
      %s29 = sadd.s32 1, %s24
      %p30 = scmp.ge.s32.totalorder %s29, 1
      %s31 = scalar_select %p30, 0, %s29
      %s32 = sadd.s32 1, %s23
      %s33 = scalar_select %p30, %s32, %s23
      %p34 = scmp.ge.s32.totalorder %s33, 2
      %s35 = scalar_select %p34, 0, %s33
      %s36 = ssub.s32 %s23, %s35
      %s37 = ssub.s32 %s24, %s31
      %s38 = sor.u32 %s36, %s37
      %p39 = scmp.eq.s32.totalorder %s38, 0
      %s41 = sadd.s32 %s40, 1
      %s42 = scalar_select %p39, %s40, %s41
      %p45 = pneg %p39
      %p46 = scmp.eq.s32.totalorder %s16, 1
      %p47 = por %p45, %p46
      %p48 = scmp.ne.s32.totalorder %s40, %s43
      %p49 = scmp.eq.s32.totalorder %s16, 0
      %p50 = por %p48, %p49
      %p51 = scmp.ne.s32.totalorder %s40, %s43
      %p52 = scmp.eq.s32.totalorder %s21, 1
      %p53 = por %p51, %p52
      %p54 = scmp.ne.s32.totalorder %s43, %s44
      %p55 = scmp.eq.s32.totalorder %s21, 0
      %p56 = por %p54, %p55
      %p57 = scmp.ne.s32.totalorder %s43, %s44
      %p58 = scmp.eq.s32.totalorder %s22, 1
      %p59 = por %p57, %p58
      %p61 = scmp.ne.s32.totalorder %s44, %s60
      %p62 = scmp.eq.s32.totalorder %s22, 0
      %p63 = por %p61, %p62
      %s65 = sadd.s32 %s64, 1
      %p68 = scmp.eq.s32.totalorder %s16, 1
      %p69 = scmp.ne.s32.totalorder %s64, %s66
      %p70 = scmp.eq.s32.totalorder %s16, 0
      %p71 = por %p69, %p70
      %p72 = scmp.ne.s32.totalorder %s64, %s66
      %p73 = scmp.eq.s32.totalorder %s21, 1
      %p74 = por %p72, %p73
      %p75 = scmp.ne.s32.totalorder %s66, %s67
      %p76 = scmp.eq.s32.totalorder %s21, 0
      %p77 = por %p75, %p76
      %p78 = scmp.ne.s32.totalorder %s66, %s67
      %p79 = scmp.eq.s32.totalorder %s22, 1
      %p80 = por %p78, %p79
      %p82 = scmp.ne.s32.totalorder %s67, %s81
      %p83 = scmp.eq.s32.totalorder %s22, 0
      %p84 = por %p82, %p83
      %s86 = sadd.s32 %s85, 1
      %p89 = scmp.eq.s32.totalorder %s16, 1
      %p90 = scmp.ne.s32.totalorder %s85, %s87
      %p91 = scmp.eq.s32.totalorder %s16, 0
      %p92 = por %p90, %p91
      %p93 = scmp.ne.s32.totalorder %s85, %s87
      %p94 = scmp.eq.s32.totalorder %s21, 1
      %p95 = por %p93, %p94
      %p96 = scmp.ne.s32.totalorder %s87, %s88
      %p97 = scmp.eq.s32.totalorder %s21, 0
      %p98 = por %p96, %p97
      %p99 = scmp.ne.s32.totalorder %s87, %s88
      %p100 = scmp.eq.s32.totalorder %s22, 1
      %p101 = por %p99, %p100
      %p103 = scmp.ne.s32.totalorder %s88, %s102
      %p104 = scmp.eq.s32.totalorder %s22, 0
      %p105 = por %p103, %p104
      %s107 = sadd.s32 %s106, 1
      %p110 = scmp.eq.s32.totalorder %s16, 1
      %p111 = scmp.ne.s32.totalorder %s106, %s108
      %p112 = scmp.eq.s32.totalorder %s16, 0
      %p113 = por %p111, %p112
      %p114 = scmp.ne.s32.totalorder %s106, %s108
      %p115 = scmp.eq.s32.totalorder %s21, 1
      %p116 = por %p114, %p115
      %p117 = scmp.ne.s32.totalorder %s108, %s109
      %p118 = scmp.eq.s32.totalorder %s21, 0
      %p119 = por %p117, %p118
      %p120 = scmp.ne.s32.totalorder %s108, %s109
      %p121 = scmp.eq.s32.totalorder %s22, 1
      %p122 = por %p120, %p121
      %p124 = scmp.ne.s32.totalorder %s109, %s123
      %p125 = scmp.eq.s32.totalorder %s22, 0
      %p126 = por %p124, %p125
      %s128 = sadd.s32 %s127, 1
      %p131 = scmp.eq.s32.totalorder %s16, 1
      %p132 = scmp.ne.s32.totalorder %s127, %s129
      %p133 = scmp.eq.s32.totalorder %s16, 0
      %p134 = por %p132, %p133
      %p135 = scmp.ne.s32.totalorder %s127, %s129
      %p136 = scmp.eq.s32.totalorder %s21, 1
      %p137 = por %p135, %p136
      %p138 = scmp.ne.s32.totalorder %s129, %s130
      %p139 = scmp.eq.s32.totalorder %s21, 0
      %p140 = por %p138, %p139
      %p141 = scmp.ne.s32.totalorder %s129, %s130
      %p142 = scmp.eq.s32.totalorder %s22, 1
      %p143 = por %p141, %p142
      %p145 = scmp.ne.s32.totalorder %s130, %s144
      %p146 = scmp.eq.s32.totalorder %s22, 0
      %p147 = por %p145, %p146
      %s149 = sadd.s32 %s148, 1
      %p152 = scmp.eq.s32.totalorder %s16, 1
      %p153 = scmp.ne.s32.totalorder %s148, %s150
      %p154 = scmp.eq.s32.totalorder %s16, 0
      %p155 = por %p153, %p154
      %p156 = scmp.ne.s32.totalorder %s148, %s150
      %p157 = scmp.eq.s32.totalorder %s21, 1
      %p158 = por %p156, %p157
      %p159 = scmp.ne.s32.totalorder %s150, %s151
      %p160 = scmp.eq.s32.totalorder %s21, 0
      %p161 = por %p159, %p160
      %p162 = scmp.ne.s32.totalorder %s150, %s151
      %p163 = scmp.eq.s32.totalorder %s22, 1
      %p164 = por %p162, %p163
      %p166 = scmp.ne.s32.totalorder %s151, %s165
      %p167 = scmp.eq.s32.totalorder %s22, 0
      %p168 = por %p166, %p167
      %s170 = sadd.s32 %s169, 1
      %p173 = scmp.eq.s32.totalorder %s16, 1
      %p174 = scmp.ne.s32.totalorder %s169, %s171
      %p175 = scmp.eq.s32.totalorder %s16, 0
      %p176 = por %p174, %p175
      %p177 = scmp.ne.s32.totalorder %s169, %s171
      %p178 = scmp.eq.s32.totalorder %s21, 1
      %p179 = por %p177, %p178
      %p180 = scmp.ne.s32.totalorder %s171, %s172
      %p181 = scmp.eq.s32.totalorder %s21, 0
      %p182 = por %p180, %p181
      %p183 = scmp.ne.s32.totalorder %s171, %s172
      %p184 = scmp.eq.s32.totalorder %s22, 1
      %p185 = por %p183, %p184
      %p187 = scmp.ne.s32.totalorder %s172, %s186
      %p188 = scmp.eq.s32.totalorder %s22, 0
      %p189 = por %p187, %p188
      %s190 = ssub.s32 %s23, %s35
      %s191 = ssub.s32 %s24, %s31
      %s192 = sor.u32 %s190, %s191
      %p193 = scmp.eq.s32.totalorder %s192, 0
      %s195 = sadd.s32 %s194, 1
      %s196 = scalar_select %p193, %s194, %s195
      %p199 = pneg %p193
      %p200 = scmp.eq.s32.totalorder %s16, 1
      %p201 = por %p199, %p200
      %p202 = scmp.ne.s32.totalorder %s194, %s197
      %p203 = scmp.eq.s32.totalorder %s16, 0
      %p204 = por %p202, %p203
      %p205 = scmp.ne.s32.totalorder %s194, %s197
      %p206 = scmp.eq.s32.totalorder %s21, 1
      %p207 = por %p205, %p206
      %p208 = scmp.ne.s32.totalorder %s197, %s198
      %p209 = scmp.eq.s32.totalorder %s21, 0
      %p210 = por %p208, %p209
      %p211 = scmp.ne.s32.totalorder %s197, %s198
      %p212 = scmp.eq.s32.totalorder %s22, 1
      %p213 = por %p211, %p212
      %p215 = scmp.ne.s32.totalorder %s198, %s214
      %p216 = scmp.eq.s32.totalorder %s22, 0
      %p217 = por %p215, %p216
      %p218 = scmp.le.s32.totalorder 1, %s16
      %p219 = scmp.lt.s32.totalorder %s16, 3
      %p220 = pnand %p218, %p219
      %p221 = pneg %p220
      // Predicated region
      $region9: #{conv_bn_relu_res1d.5} parent=5 // pred_check
        _
      $region10: #{conv_bn_relu_res1d.5} parent=5 // pred_check_branch
        %223 = sbr.rel (%p220) target = $region12
      $region11: #{conv_bn_relu_res1d.5} parent=5 // pred_region
        %s224 = ssub.s32 %s16, 1
        // Predicated region
        $region13: #{conv_bn_relu_res1d.5} parent=11 // pred_check
          %p225 = pneg %p77
        $region14: #{conv_bn_relu_res1d.5} parent=11 // pred_check_branch
          %227 = sbr.rel (%p225) target = $region16
        $region15: #{conv_bn_relu_res1d.5} parent=11 // pred_region
          _
        $region16: #{conv_bn_relu_res1d.5} parent=11 // pred_fallthru
          _
        // Predicated region
        $region17: #{conv_bn_relu_res1d.5} parent=11 // pred_check
          %p228 = pneg %p98
        $region18: #{conv_bn_relu_res1d.5} parent=11 // pred_check_branch
          %230 = sbr.rel (%p228) target = $region20
        $region19: #{conv_bn_relu_res1d.5} parent=11 // pred_region
          _
        $region20: #{conv_bn_relu_res1d.5} parent=11 // pred_fallthru
          _
        // Predicated region
        $region21: #{conv_bn_relu_res1d.5} parent=11 // pred_check
          %p231 = pneg %p119
        $region22: #{conv_bn_relu_res1d.5} parent=11 // pred_check_branch
          %233 = sbr.rel (%p231) target = $region24
        $region23: #{conv_bn_relu_res1d.5} parent=11 // pred_region
          _
        $region24: #{conv_bn_relu_res1d.5} parent=11 // pred_fallthru
          _
        // Predicated region
        $region25: #{conv_bn_relu_res1d.5} parent=11 // pred_check
          %p234 = pneg %p140
        $region26: #{conv_bn_relu_res1d.5} parent=11 // pred_check_branch
          %236 = sbr.rel (%p234) target = $region28
        $region27: #{conv_bn_relu_res1d.5} parent=11 // pred_region
          _
        $region28: #{conv_bn_relu_res1d.5} parent=11 // pred_fallthru
          _
        // Predicated region
        $region29: #{conv_bn_relu_res1d.5} parent=11 // pred_check
          %p237 = pneg %p161
        $region30: #{conv_bn_relu_res1d.5} parent=11 // pred_check_branch
          %239 = sbr.rel (%p237) target = $region32
        $region31: #{conv_bn_relu_res1d.5} parent=11 // pred_region
          _
        $region32: #{conv_bn_relu_res1d.5} parent=11 // pred_fallthru
          _
        // Predicated region
        $region33: #{conv_bn_relu_res1d.5} parent=11 // pred_check
          %p240 = pneg %p182
        $region34: #{conv_bn_relu_res1d.5} parent=11 // pred_check_branch
          %242 = sbr.rel (%p240) target = $region36
        $region35: #{conv_bn_relu_res1d.5} parent=11 // pred_region
          _
        $region36: #{conv_bn_relu_res1d.5} parent=11 // pred_fallthru
          _
      $region12: #{conv_bn_relu_res1d.5} parent=5 // pred_fallthru
        _
      %p243 = scmp.lt.s32.totalorder %s16, 2
      // Predicated region
      $region37: #{conv_bn_relu_res1d.5} parent=5 // pred_check
        %p244 = pneg %p243
      $region38: #{conv_bn_relu_res1d.5} parent=5 // pred_check_branch
        %246 = sbr.rel (%p244) target = $region40
      $region39: #{conv_bn_relu_res1d.5} parent=5 // pred_region
        // Predicated region
        $region41: #{conv_bn_relu_res1d.5} parent=39 // pred_check
          %p247 = pneg %p50
        $region42: #{conv_bn_relu_res1d.5} parent=39 // pred_check_branch
          %249 = sbr.rel (%p247) target = $region44
        $region43: #{conv_bn_relu_res1d.5} parent=39 // pred_region
          %s250 = smul.u32 2, %s24
          %p251 = scmp.lt.s32.totalorder %s23, 1
          %s252 = scalar_select %p251, %s23, 1
          %p253 = scmp.lt.s32.totalorder %s250, 1
          %s254 = scalar_select %p253, %s250, 1
          %s255 = smul.addr %s252, 4
          %s256 = sadd.s32 %s254, %s255
          %s257 = smul.addr %s256, 8
          %s258 = scalar_lea.vmem %s0, %s257
          %s259 = smul.u32 2, %s24
        $region44: #{conv_bn_relu_res1d.5} parent=39 // pred_fallthru
          _
      $region40: #{conv_bn_relu_res1d.5} parent=5 // pred_fallthru
        _
      %p260 = scmp.le.s32.totalorder 1, %s16
      %p261 = scmp.lt.s32.totalorder %s16, 3
      %p262 = pnand %p260, %p261
      %p263 = pneg %p262
      // Predicated region
      $region45: #{conv_bn_relu_res1d.5} parent=5 // pred_check
        _
      $region46: #{conv_bn_relu_res1d.5} parent=5 // pred_check_branch
        %265 = sbr.rel (%p262) target = $region48
      $region47: #{conv_bn_relu_res1d.5} parent=5 // pred_region
        %s266 = ssub.s32 %s16, 1
        %s267 = smul.u32 2, %s26
        %p268 = scmp.lt.s32.totalorder %s25, 1
        %s269 = scalar_select %p268, %s25, 1
        %p270 = scmp.lt.s32.totalorder %s267, 1
        %s271 = scalar_select %p270, %s267, 1
        %s272 = smul.addr %s269, 4
        %s273 = sadd.s32 %s271, %s272
        %s274 = smul.addr %s273, 8
        %s275 = scalar_lea.vmem %s0, %s274
        %p276 = pneg %p56
        %p277 = pneg %p53
        %p278 = pneg %p77
        %p279 = pneg %p74
        %p280 = pneg %p98
        %p281 = pneg %p95
        %p282 = pneg %p119
        %p283 = pneg %p116
        %p284 = pneg %p140
        %p285 = pneg %p137
        %p286 = pneg %p161
        %p287 = pneg %p158
        %p288 = pneg %p182
        %p289 = pneg %p179
        %p290 = pneg %p210
        %p291 = pneg %p207
        %s292 = sand.u32 %s197, 1
        %s293 = scalar_lea.sflag [#allocation3], %s292
        %s294 = sand.u32 %s197, 1
        %s295 = smul.addr %s294, 32
        %s296 = scalar_lea.vmem [#allocation2], %s295
        %s297 = smul.u32 2, %s26
        %p298 = scmp.lt.s32.totalorder %s25, 1
        %s299 = scalar_select %p298, %s25, 1
        %p300 = scmp.lt.s32.totalorder %s297, 1
        %s301 = scalar_select %p300, %s297, 1
        %s302 = smul.addr %s299, 4
        %s303 = sadd.s32 %s301, %s302
        %s304 = smul.addr %s303, 8
        %s305 = scalar_lea.vmem %s0, %s304
        %s306 = smul.u32 2, %s26
        %s307 = smul.u32 2, %s26
        %v308 = vld [vmem:[%s305] sm:$0xff]
        %v309 = vld [vmem:[%s305 + $0x8] sm:$0xff]
        %v310 = vld [vmem:[%s305 + $0x10] sm:$0xff]
        %v311 = vld [vmem:[%s305 + $0x18] sm:$0xff]
        %v312 = vld [vmem:[%s1] sm:$0xff]
        %v313 = vld [vmem:[%s1 + $0x8] sm:$0xff]
        %vm314 = vcmask 130048
        %v316 = vsel %vm314, %v312, 0
        %v319 = vsel %vm314, %v313, 0
        %321 = vmatprep.subr.mxu0 %v309
        %322 = vmatpush1.msra.mxu0 %v308
        %323 = vmatprep.subr.mxu0 %v311
        %324 = vmatpush1.msra.mxu0 %v310
        %325 = vmatprep.subr.mxu0 0.0
        %326 = vmatpush1.msra.mxu0 0.0
        %327 = vmatprep.subr.mxu0 0.0
        %328 = vmatpush1.msra.mxu0 0.0
        %329 = vmatprep.subr.mxu0 0.0
        %330 = vmatpush1.msra.mxu0 0.0
        %331 = vmatprep.subr.mxu0 0.0
        %332 = vmatpush1.msra.mxu0 0.0
        %333 = vmatprep.subr.mxu0 0.0
        %334 = vmatpush1.msra.mxu0 0.0
        %335 = vmatprep.subr.mxu0 0.0
        %336 = vmatpush1.msra.mxu0 0.0
        %337 = vmatprep.subr.mxu0 0.0
        %338 = vmatpush1.msra.mxu0 0.0
        %339 = vmatprep.subr.mxu0 0.0
        %340 = vmatpush1.msra.mxu0 0.0
        %341 = vmatprep.subr.mxu0 0.0
        %342 = vmatpush1.msra.mxu0 0.0
        %343 = vmatprep.subr.mxu0 0.0
        %344 = vmatpush1.msra.mxu0 0.0
        %345 = vmatprep.subr.mxu0 0.0
        %346 = vmatpush1.msra.mxu0 0.0
        %347 = vmatprep.subr.mxu0 0.0
        %348 = vmatpush1.msra.mxu0 0.0
        %349 = vmatprep.subr.mxu0 0.0
        %350 = vmatpush1.msra.mxu0 0.0
        %351 = vmatprep.subr.mxu0 0.0
        %352 = vmatpush1.msra.mxu0 0.0
        %353 = vmatprep.subr.mxu0 0.0
        %354 = vmatpush1.msra.mxu0 0.0
        %355 = vmatprep.subr.mxu0 0.0
        %356 = vmatpush1.msra.mxu0 0.0
        %357 = vmatprep.subr.mxu0 0.0
        %358 = vmatpush1.msra.mxu0 0.0
        %359 = vmatprep.subr.mxu0 0.0
        %360 = vmatpush1.msra.mxu0 0.0
        %361 = vmatprep.subr.mxu0 0.0
        %362 = vmatpush1.msra.mxu0 0.0
        %363 = vmatprep.subr.mxu0 0.0
        %364 = vmatpush1.msra.mxu0 0.0
        %365 = vmatprep.subr.mxu0 0.0
        %366 = vmatpush1.msra.mxu0 0.0
        %367 = vmatprep.subr.mxu0 0.0
        %368 = vmatpush1.msra.mxu0 0.0
        %369 = vmatprep.subr.mxu0 0.0
        %370 = vmatpush1.msra.mxu0 0.0
        %371 = vmatprep.subr.mxu0 0.0
        %372 = vmatpush1.msra.mxu0 0.0
        %373 = vmatprep.subr.mxu0 0.0
        %374 = vmatpush1.msra.mxu0 0.0
        %375 = vmatprep.subr.mxu0 0.0
        %376 = vmatpush1.msra.mxu0 0.0
        %377 = vmatprep.subr.mxu0 0.0
        %378 = vmatpush1.msra.mxu0 0.0
        %379 = vmatprep.subr.mxu0 0.0
        %380 = vmatpush1.msra.mxu0 0.0
        %381 = vmatprep.subr.mxu0 0.0
        %382 = vmatpush1.msra.mxu0 0.0
        %383 = vmatprep.subr.mxu0 0.0
        %384 = vmatpush1.msra.mxu0 0.0
        %385 = vmatprep.mubr.f32.mxu0 0.0
        %386 = vmatmul.mubr.f32.gmra.mrb[0].mxu0 %v316
        %v387 = vpop.f32.mrb[0].mxu0
        %v388 = vadd.f32 0.0, %v387
        %v389 = vpop.f32.mrb[0].mxu0
        %v390 = vadd.f32 0.0, %v389
        %391 = vmatprep.mubr.f32.mxu0 0.0
        %392 = vmatmul.mubr.f32.gmra.mrb[0].mxu0 %v319
        %v393 = vpop.f32.mrb[0].mxu0
        %v394 = vadd.f32 0.0, %v393
        %v395 = vpop.f32.mrb[0].mxu0
        %v396 = vadd.f32 0.0, %v395
        %397 = vdwg.mxu0
        %v398 = vld [vmem:[%s2] sm:$0xff]
        %v399 = vld [vmem:[%s2 + $0x8] sm:$0xff]
        %401 = vset.pattern.permute.xlu0 0
        %402 = vperm.xlu0 %401, %v398
        %v403 = vpop.permute.xlu0 %402
        %406 = vset.pattern.permute.xlu0 0
        %407 = vperm.xlu0 %406, %v399
        %v408 = vpop.permute.xlu0 %407
        %v410 = vmul.f32 %v388, %v403
        %v411 = vmul.f32 %v390, %v403
        %v412 = vmul.f32 %v394, %v408
        %v413 = vmul.f32 %v396, %v408
        %v414 = vld [vmem:[%s3] sm:$0xff]
        %v415 = vld [vmem:[%s3 + $0x8] sm:$0xff]
        %417 = vset.pattern.permute.xlu0 0
        %418 = vperm.xlu0 %417, %v414
        %v419 = vpop.permute.xlu0 %418
        %422 = vset.pattern.permute.xlu0 0
        %423 = vperm.xlu0 %422, %v415
        %v424 = vpop.permute.xlu0 %423
        %v426 = vadd.f32 %v410, %v419
        %v427 = vadd.f32 %v411, %v419
        %v428 = vadd.f32 %v412, %v424
        %v429 = vadd.f32 %v413, %v424
        %v430 = vmul.f32 %v426, 0.5
        %v431 = vmul.f32 %v427, 0.5
        %v432 = vmul.f32 %v428, 0.5
        %v433 = vmul.f32 %v429, 0.5
        %v434 = vmul.f32 %v426, 0.70710677
        %v435 = vmul.f32 %v427, 0.70710677
        %v436 = vmul.f32 %v428, 0.70710677
        %v437 = vmul.f32 %v429, 0.70710677
        %v438 = verf.f32.pop %v434
        %v439 = verf.f32.pop %v435
        %v440 = verf.f32.pop %v436
        %v441 = verf.f32.pop %v437
        %v442 = vadd.f32 %v438, 1.0
        %v443 = vadd.f32 %v439, 1.0
        %v444 = vadd.f32 %v440, 1.0
        %v445 = vadd.f32 %v441, 1.0
        %v446 = vmul.f32 %v430, %v442
        %v447 = vmul.f32 %v431, %v443
        %v448 = vmul.f32 %v432, %v444
        %v449 = vmul.f32 %v433, %v445
        %v450 = vld [vmem:[%s4] sm:$0xff]
        %v451 = vld [vmem:[%s4 + $0x8] sm:$0xff]
        %v453 = vsel %vm314, %v450, 0
        %v456 = vsel %vm314, %v451, 0
        %458 = vmatprep.subr.mxu0 %v447
        %459 = vmatpush1.msra.mxu0 %v446
        %460 = vmatprep.subr.mxu0 %v449
        %461 = vmatpush1.msra.mxu0 %v448
        %462 = vmatprep.subr.mxu0 0.0
        %463 = vmatpush1.msra.mxu0 0.0
        %464 = vmatprep.subr.mxu0 0.0
        %465 = vmatpush1.msra.mxu0 0.0
        %466 = vmatprep.subr.mxu0 0.0
        %467 = vmatpush1.msra.mxu0 0.0
        %468 = vmatprep.subr.mxu0 0.0
        %469 = vmatpush1.msra.mxu0 0.0
        %470 = vmatprep.subr.mxu0 0.0
        %471 = vmatpush1.msra.mxu0 0.0
        %472 = vmatprep.subr.mxu0 0.0
        %473 = vmatpush1.msra.mxu0 0.0
        %474 = vmatprep.subr.mxu0 0.0
        %475 = vmatpush1.msra.mxu0 0.0
        %476 = vmatprep.subr.mxu0 0.0
        %477 = vmatpush1.msra.mxu0 0.0
        %478 = vmatprep.subr.mxu0 0.0
        %479 = vmatpush1.msra.mxu0 0.0
        %480 = vmatprep.subr.mxu0 0.0
        %481 = vmatpush1.msra.mxu0 0.0
        %482 = vmatprep.subr.mxu0 0.0
        %483 = vmatpush1.msra.mxu0 0.0
        %484 = vmatprep.subr.mxu0 0.0
        %485 = vmatpush1.msra.mxu0 0.0
        %486 = vmatprep.subr.mxu0 0.0
        %487 = vmatpush1.msra.mxu0 0.0
        %488 = vmatprep.subr.mxu0 0.0
        %489 = vmatpush1.msra.mxu0 0.0
        %490 = vmatprep.subr.mxu0 0.0
        %491 = vmatpush1.msra.mxu0 0.0
        %492 = vmatprep.subr.mxu0 0.0
        %493 = vmatpush1.msra.mxu0 0.0
        %494 = vmatprep.subr.mxu0 0.0
        %495 = vmatpush1.msra.mxu0 0.0
        %496 = vmatprep.subr.mxu0 0.0
        %497 = vmatpush1.msra.mxu0 0.0
        %498 = vmatprep.subr.mxu0 0.0
        %499 = vmatpush1.msra.mxu0 0.0
        %500 = vmatprep.subr.mxu0 0.0
        %501 = vmatpush1.msra.mxu0 0.0
        %502 = vmatprep.subr.mxu0 0.0
        %503 = vmatpush1.msra.mxu0 0.0
        %504 = vmatprep.subr.mxu0 0.0
        %505 = vmatpush1.msra.mxu0 0.0
        %506 = vmatprep.subr.mxu0 0.0
        %507 = vmatpush1.msra.mxu0 0.0
        %508 = vmatprep.subr.mxu0 0.0
        %509 = vmatpush1.msra.mxu0 0.0
        %510 = vmatprep.subr.mxu0 0.0
        %511 = vmatpush1.msra.mxu0 0.0
        %512 = vmatprep.subr.mxu0 0.0
        %513 = vmatpush1.msra.mxu0 0.0
        %514 = vmatprep.subr.mxu0 0.0
        %515 = vmatpush1.msra.mxu0 0.0
        %516 = vmatprep.subr.mxu0 0.0
        %517 = vmatpush1.msra.mxu0 0.0
        %518 = vmatprep.subr.mxu0 0.0
        %519 = vmatpush1.msra.mxu0 0.0
        %520 = vmatprep.subr.mxu0 0.0
        %521 = vmatpush1.msra.mxu0 0.0
        %522 = vmatprep.mubr.f32.mxu0 0.0
        %523 = vmatmul.mubr.f32.gmra.mrb[0].mxu0 %v453
        %v524 = vpop.f32.mrb[0].mxu0
        %v525 = vadd.f32 0.0, %v524
        %v526 = vpop.f32.mrb[0].mxu0
        %v527 = vadd.f32 0.0, %v526
        %528 = vmatprep.mubr.f32.mxu0 0.0
        %529 = vmatmul.mubr.f32.gmra.mrb[0].mxu0 %v456
        %v530 = vpop.f32.mrb[0].mxu0
        %v531 = vadd.f32 0.0, %v530
        %v532 = vpop.f32.mrb[0].mxu0
        %v533 = vadd.f32 0.0, %v532
        %534 = vdwg.mxu0
        %v535 = vld [vmem:[%s5] sm:$0xff]
        %v536 = vld [vmem:[%s5 + $0x8] sm:$0xff]
        %538 = vset.pattern.permute.xlu0 0
        %539 = vperm.xlu0 %538, %v535
        %v540 = vpop.permute.xlu0 %539
        %543 = vset.pattern.permute.xlu0 0
        %544 = vperm.xlu0 %543, %v536
        %v545 = vpop.permute.xlu0 %544
        %v547 = vmul.f32 %v525, %v540
        %v548 = vmul.f32 %v527, %v540
        %v549 = vmul.f32 %v531, %v545
        %v550 = vmul.f32 %v533, %v545
        %v551 = vld [vmem:[%s6] sm:$0xff]
        %v552 = vld [vmem:[%s6 + $0x8] sm:$0xff]
        %554 = vset.pattern.permute.xlu0 0
        %555 = vperm.xlu0 %554, %v551
        %v556 = vpop.permute.xlu0 %555
        %559 = vset.pattern.permute.xlu0 0
        %560 = vperm.xlu0 %559, %v552
        %v561 = vpop.permute.xlu0 %560
        %v563 = vadd.f32 %v547, %v556
        %v564 = vadd.f32 %v548, %v556
        %v565 = vadd.f32 %v549, %v561
        %v566 = vadd.f32 %v550, %v561
        %v567 = vadd.f32 %v563, %v308
        %v568 = vadd.f32 %v564, %v309
        %v569 = vadd.f32 %v565, %v310
        %v570 = vadd.f32 %v566, %v311
        %v571 = vmul.f32 %v567, 0.5
        %v572 = vmul.f32 %v568, 0.5
        %v573 = vmul.f32 %v569, 0.5
        %v574 = vmul.f32 %v570, 0.5
        %v575 = vmul.f32 %v567, 0.70710677
        %v576 = vmul.f32 %v568, 0.70710677
        %v577 = vmul.f32 %v569, 0.70710677
        %v578 = vmul.f32 %v570, 0.70710677
        %v579 = verf.f32.pop %v575
        %v580 = verf.f32.pop %v576
        %v581 = verf.f32.pop %v577
        %v582 = verf.f32.pop %v578
        %v583 = vadd.f32 %v579, 1.0
        %v584 = vadd.f32 %v580, 1.0
        %v585 = vadd.f32 %v581, 1.0
        %v586 = vadd.f32 %v582, 1.0
        %v587 = vmul.f32 %v571, %v583
        %v588 = vmul.f32 %v572, %v584
        %v589 = vmul.f32 %v573, %v585
        %v590 = vmul.f32 %v574, %v586
        %591 = vst [vmem:[%s296] sm:$0xff] %v587
        %592 = vst [vmem:[%s296 + $0x8] sm:$0xff] %v588
        %593 = vst [vmem:[%s296 + $0x10] sm:$0xff] %v589
        %594 = vst [vmem:[%s296 + $0x18] sm:$0xff] %v590
        %s595 = sand.u32 %s197, 1
        %s596 = scalar_lea.sflag [#allocation3], %s595
        %s597 = sand.u32 %s197, 1
        %s598 = smul.addr %s597, 32
        %s599 = scalar_lea.vmem [#allocation2], %s598
        // Predicated region
        $region49: #{conv_bn_relu_res1d.5} parent=47 // pred_check
          %p600 = pneg %p207
        $region50: #{conv_bn_relu_res1d.5} parent=47 // pred_check_branch
          %602 = sbr.rel (%p600) target = $region52
        $region51: #{conv_bn_relu_res1d.5} parent=47 // pred_region
          %s603 = smul.u32 2, %s26
          %s605 = ssub.s32 512, 512
          %606 = vsyncadd %s596, %s605
          %s607 = smul.addr %s25, 4
          %s608 = sadd.s32 %s603, %s607
          %s609 = smul.addr %s608, 128
          %s610 = scalar_lea.hbm %s7, %s609
          %s611 = sshll.u32 %s599, 4
          %s612 = int_to_ptr.vmem [resolvable:$true] %s611
          %617 = dma.vmem_to_hbm [thread:$0]  %s612, 512, %s610, %s596, 256, 256, 16
        $region52: #{conv_bn_relu_res1d.5} parent=47 // pred_fallthru
          _
      $region48: #{conv_bn_relu_res1d.5} parent=5 // pred_fallthru
        _
      %p618 = scmp.le.s32.totalorder 2, %s16
      // Predicated region
      $region53: #{conv_bn_relu_res1d.5} parent=5 // pred_check
        %p619 = pneg %p618
      $region54: #{conv_bn_relu_res1d.5} parent=5 // pred_check_branch
        %621 = sbr.rel (%p619) target = $region56
      $region55: #{conv_bn_relu_res1d.5} parent=5 // pred_region
        %s622 = ssub.s32 %s16, 2
        // Predicated region
        $region57: #{conv_bn_relu_res1d.5} parent=55 // pred_check
          %p623 = pneg %p213
        $region58: #{conv_bn_relu_res1d.5} parent=55 // pred_check_branch
          %625 = sbr.rel (%p623) target = $region60
        $region59: #{conv_bn_relu_res1d.5} parent=55 // pred_region
          %s626 = sand.u32 %s198, 1
          %s627 = scalar_lea.sflag [#allocation3], %s626
          %s628 = sand.u32 %s198, 1
          %s629 = smul.addr %s628, 32
          %s630 = scalar_lea.vmem [#allocation2], %s629
          %631 = dma.done %s627, 512
        $region60: #{conv_bn_relu_res1d.5} parent=55 // pred_fallthru
          _
      $region56: #{conv_bn_relu_res1d.5} parent=5 // pred_fallthru
        _
    $region6: #{conv_bn_relu_res1d.5} parent=1 // loop_footer
      %s20 = sadd.s32 1, %s16
    $region7: #{conv_bn_relu_res1d.5} parent=1 // loop_footer_branch
      %15 = sbr.rel target = $region3
    $region8: #{conv_bn_relu_res1d.5} parent=1 // loop_exit
      _
    %632 = vsyncpa [#allocation3], 1
    %s633 = scalar_lea.sflag [#allocation3], 1
    %634 = vsyncpa %s633, 1

</llo_original>
